<compile_context>
chip_gen: v6e
topology: v6e:2x2x1
jax: 0.10.0
libtpu: 0.0.40
codegen_flags: <defaults>
</compile_context>

<pallas_src>
import jax
import jax.numpy as jnp
from jax import lax
from jax.experimental import pallas as pl
from jax.experimental.pallas import tpu as pltpu

# ---- small config consistent with the module structure ----
N     = 2      # batch
T     = 8      # question length   (module: 300)
E     = 16     # embedding size == text_vec_size (module: 1024)
HID   = 16     # LSTM hidden == text_vec_size
V     = 32     # image channels    (module: 2048)
HW    = 4      # spatial side -> S = 16
S     = HW * HW
MID   = 8      # fusion mid        (module: 512)
G     = 2      # glimpses
NCLS  = 10     # num classes       (module: 3001)
VOCAB = 50
HC    = HID                               # classifier mid features (module: text_vec_size)
NCLS_PAD = ((NCLS + 127) // 128) * 128    # lane-dense output store (pad last dim to 128)


# ------------------------- fused Pallas kernel -------------------------

def fused_kernel(emb_ref, mask_ref, v_ref, seg_ref,
                 wih_ref, whh_ref, blstm_ref,
                 wvt_ref, bvq_ref, wqt_ref, wxt_ref, bx_ref,
                 w1i_ref, w1t_ref, b1_ref, w2_ref, b2_ref,
                 out_ref):
    f32 = jnp.float32

    # ---------- TextProcessing: tanh(embedding) -> LSTM, return final cell state ----------
    # Hoisted input projection: one (T*N, 4H) matmul with the bias folded in once; it stays
    # a value and is sliced with static offsets in the unrolled loop (no scratch round-trip).
    xw = jnp.dot(jnp.tanh(emb_ref[...]), wih_ref[...],
                 preferred_element_type=f32) + blstm_ref[...]            # (T*N, 4H) [i|f|o|g]
    whh = whh_ref[...]
    maskf = mask_ref[...]                                                # (N, T) {0,1} float

    h = jnp.zeros((N, HID), f32)
    c = jnp.zeros((N, HID), f32)
    # TODO(synk): at T=300 switch to lax.fori_loop with partial unroll (4-8), not full unroll.
    for t in range(T):
        gates = xw[t * N:(t + 1) * N, :] + jnp.dot(h, whh, preferred_element_type=f32)
        sig = jax.nn.sigmoid(gates[:, :3 * HID])        # fused i, f, o sigmoid
        g_in = jnp.tanh(gates[:, 3 * HID:])
        i_g = sig[:, :HID]
        f_g = sig[:, HID:2 * HID]
        o_g = sig[:, 2 * HID:3 * HID]
        c_new = f_g * c + i_g * g_in
        h_new = o_g * jnp.tanh(c_new)
        v_t = maskf[:, t:t + 1] != 0.0                  # (N, 1) valid-while-t<q_len
        c = jnp.where(v_t, c_new, c)
        h = jnp.where(v_t, h_new, h)
    text = c                                            # (N, HID) final cell state

    # ---------- Fusion + average_layer, batched over the whole batch ----------
    # Layout: MID / G on sublanes, N*S on lanes.  seg[n, col] = 1 iff lane col belongs to
    # sample n; matmuls against seg are exact per-sample broadcasts / reductions.
    v_all = v_ref[...]                                                     # (V, N*S)
    seg = seg_ref[...]                                                     # (N, N*S)

    vp = jnp.dot(wvt_ref[...], v_all, preferred_element_type=f32)          # (MID, N*S)
    qp = lax.dot_general(wqt_ref[...], text, (((1,), (1,)), ((), ())),
                         preferred_element_type=f32)                       # (MID, N)
    qp_slab = jnp.dot(qp, seg, preferred_element_type=f32)                 # (MID, N*S)
    x = jax.nn.relu(vp + qp_slab + bvq_ref[...])                           # (MID, N*S)
    logits = jnp.dot(wxt_ref[...], x,
                     preferred_element_type=f32) + bx_ref[...]             # (G, N*S)

    # Segmented (per-sample) softmax over the S lanes of each segment.
    m_slab = jnp.zeros_like(logits)
    for n in range(N):        # cheap XLU max per sample; exp / sum / normalize stay full-width
        m_n = jnp.max(logits[:, n * S:(n + 1) * S], axis=-1, keepdims=True)   # (G, 1)
        m_slab = m_slab + m_n * seg[n:n + 1, :]
    e = jnp.exp(logits - m_slab)                                            # (G, N*S)
    ssum = lax.dot_general(e, seg, (((1,), (1,)), ((), ())),
                           preferred_element_type=f32)                      # (G, N)
    den_slab = jnp.dot(ssum, seg, preferred_element_type=f32)               # (G, N*S)
    p_att = e * pl.reciprocal(den_slab, approx=True)                        # (G, N*S)

    # ---------- Classifier, batched over N (concat([img_vec, text_vec]) never built) ----------
    hmid = jnp.dot(text, w1t_ref[...], preferred_element_type=f32) + b1_ref[...]   # (N, HC)
    for g in range(G):
        # att_g[n, :] = sum_s p[g, n, s] * v[n, :, s]  -- one lane-dense S-contraction
        att_g = lax.dot_general(seg, v_all * p_att[g:g + 1, :],
                                (((1,), (1,)), ((), ())),
                                preferred_element_type=f32)                  # (N, V)
        hmid = hmid + jnp.dot(att_g, w1i_ref[g * V:(g + 1) * V, :],
                              preferred_element_type=f32)
    hmid = jax.nn.relu(hmid)
    out_ref[...] = jnp.dot(hmid, w2_ref[...],
                           preferred_element_type=f32) + b2_ref[...]         # (N, NCLS_PAD)


# ------------------------- wrapper -------------------------

def _full(shape):
    return pl.BlockSpec(shape, lambda *_: (0,) * len(shape))


def tiled_attention_fused(*args):
    # TODO(synk): at module scale add a "parallel" batch grid axis (v7x megacore) and stream
    #             the big weights via reduction grid axes + explicit vmem_limit_bytes.
    return pl.pallas_call(
        fused_kernel,
        out_shape=jax.ShapeDtypeStruct((N, NCLS_PAD), jnp.float32),
        grid=(1,),
        in_specs=[_full(a.shape) for a in args],
        out_specs=_full((N, NCLS_PAD)),
        compiler_params=pltpu.CompilerParams(dimension_semantics=("arbitrary",)),
    )(*args)


def _reorder_gates(w):
    # LSTM gate columns [i|f|g|o] -> [i|f|o|g] so one sigmoid covers the first 3H columns.
    return jnp.concatenate([w[..., :2 * HID], w[..., 3 * HID:4 * HID],
                            w[..., 2 * HID:3 * HID]], axis=-1)


def tiled_attention_forward(tokens, img_nchw, q_len, p):
    # glue: embedding gather, time-major flatten, {0,1} length mask, (V, N*S) image slab,
    # one-time parameter re-orientation (layout only, no math)
    emb = jnp.transpose(p['emb'][tokens], (1, 0, 2)).reshape(T * N, E)             # (T*N, E)
    mask = (jnp.arange(T)[None, :] < q_len[:, None]).astype(jnp.float32)           # (N, T)
    v_all = jnp.transpose(img_nchw.reshape(N, V, S), (1, 0, 2)).reshape(V, N * S)  # (V, N*S)
    seg = (jnp.arange(N * S)[None, :] // S ==
           jnp.arange(N)[:, None]).astype(jnp.float32)                             # (N, N*S)

    wih_k = _reorder_gates(p['wih'])
    whh_k = _reorder_gates(p['whh'])
    bl_k = _reorder_gates(p['b_lstm'])

    wv_t = p['wv'].T                      # (MID, V)
    wq_t = p['wq'].T                      # (MID, HID)
    wx_t = p['wx'].T                      # (G, MID)
    bvq = (p['bv'] + p['bq']).T           # (MID, 1)
    bx_c = p['bx'].T                      # (G, 1)
    w1_img, w1_txt = p['w1'][:G * V], p['w1'][G * V:]
    w2_pad = jnp.zeros((HC, NCLS_PAD), jnp.float32).at[:, :NCLS].set(p['w2'])
    b2_pad = jnp.zeros((1, NCLS_PAD), jnp.float32).at[:, :NCLS].set(p['b2'])

    out_pad = tiled_attention_fused(emb, mask, v_all, seg,
                                    wih_k, whh_k, bl_k,
                                    wv_t, bvq, wq_t, wx_t, bx_c,
                                    w1_img, w1_txt, p['b1'], w2_pad, b2_pad)
    return out_pad[:, :NCLS]


# ------------------------- reference (plain JAX) -------------------------

def reference_forward(tokens, img_nchw, q_len, p):
    emb = jnp.tanh(p['emb'][tokens])                          # (N, T, E)
    h = jnp.zeros((N, HID), jnp.float32)
    c = jnp.zeros((N, HID), jnp.float32)
    for t in range(T):
        x_t = emb[:, t, :]
        gates = x_t @ p['wih'] + h @ p['whh'] + p['b_lstm']
        i = jax.nn.sigmoid(gates[:, :HID])
        f = jax.nn.sigmoid(gates[:, HID:2 * HID])
        g = jnp.tanh(gates[:, 2 * HID:3 * HID])
        o = jax.nn.sigmoid(gates[:, 3 * HID:])
        c_new = f * c + i * g
        h_new = o * jnp.tanh(c_new)
        valid = (t < q_len)[:, None]
        c = jnp.where(valid, c_new, c)
        h = jnp.where(valid, h_new, h)
    text_vec = c
    v = jnp.transpose(img_nchw.reshape(N, V, S), (0, 2, 1))   # (N, S, V)
    vp = jnp.einsum('nsv,vm->nsm', v, p['wv']) + p['bv']
    qp = text_vec @ p['wq'] + p['bq']
    x = jax.nn.relu(vp + qp[:, None, :])
    logits = jnp.einsum('nsm,mg->nsg', x, p['wx']) + p['bx']
    pa = jax.nn.softmax(logits, axis=1)
    img_vec = jnp.einsum('nsg,nsv->ngv', pa, v).reshape(N, G * V)
    vec = jnp.concatenate([img_vec, text_vec], axis=1)
    hcls = jax.nn.relu(vec @ p['w1'] + p['b1'])
    return hcls @ p['w2'] + p['b2']


# ------------------------- main -------------------------

if __name__ == "__main__":
    key = jax.random.PRNGKey(0)
    ks = jax.random.split(key, 16)

    def init(k, shape, scale=0.1):
        return (scale * jax.random.normal(k, shape)).astype(jnp.float32)

    params = {
        'emb':    init(ks[0], (VOCAB, E)),
        'wih':    init(ks[1], (E, 4 * HID)),
        'whh':    init(ks[2], (HID, 4 * HID)),
        'b_lstm': init(ks[3], (1, 4 * HID)),
        'wv':     init(ks[4], (V, MID)),
        'bv':     init(ks[5], (1, MID)),
        'wq':     init(ks[6], (HID, MID)),
        'bq':     init(ks[7], (1, MID)),
        'wx':     init(ks[8], (MID, G)),
        'bx':     init(ks[9], (1, G)),
        'w1':     init(ks[10], (G * V + HID, HC)),
        'b1':     init(ks[11], (1, HC)),
        'w2':     init(ks[12], (HC, NCLS)),
        'b2':     init(ks[13], (1, NCLS)),
    }

    tokens = jax.random.randint(ks[14], (N, T), 1, VOCAB)            # text_vec (token ids)
    img = jax.random.normal(ks[15], (N, V, HW, HW), jnp.float32)     # img_vec (NCHW)
    q_len = jnp.array([T, T - 3], dtype=jnp.int32)                   # q_len

    out = tiled_attention_forward(tokens, img, q_len, params)
    out = jax.block_until_ready(out)

    with jax.default_matmul_precision("highest"):
        ref = reference_forward(tokens, img, q_len, params)
    assert out.shape == (N, NCLS)
    assert jnp.allclose(out, ref, atol=2e-3, rtol=2e-3), (out - ref)

    print("KERNEL_OK")
</pallas_src>

<mosaic_0001>
module attributes {stable_mosaic.version = 11 : i64} {
  func.func @fused_kernel(%arg0: i32, %arg1: memref<16x16xf32, #tpu.memory_space<vmem>>, %arg2: memref<2x8xf32, #tpu.memory_space<vmem>>, %arg3: memref<32x32xf32, #tpu.memory_space<vmem>>, %arg4: memref<2x32xf32, #tpu.memory_space<vmem>>, %arg5: memref<16x64xf32, #tpu.memory_space<vmem>>, %arg6: memref<16x64xf32, #tpu.memory_space<vmem>>, %arg7: memref<1x64xf32, #tpu.memory_space<vmem>>, %arg8: memref<8x32xf32, #tpu.memory_space<vmem>>, %arg9: memref<8x1xf32, #tpu.memory_space<vmem>>, %arg10: memref<8x16xf32, #tpu.memory_space<vmem>>, %arg11: memref<2x8xf32, #tpu.memory_space<vmem>>, %arg12: memref<2x1xf32, #tpu.memory_space<vmem>>, %arg13: memref<64x16xf32, #tpu.memory_space<vmem>>, %arg14: memref<16x16xf32, #tpu.memory_space<vmem>>, %arg15: memref<1x16xf32, #tpu.memory_space<vmem>>, %arg16: memref<16x128xf32, #tpu.memory_space<vmem>>, %arg17: memref<1x128xf32, #tpu.memory_space<vmem>>, %arg18: memref<2x128xf32, #tpu.memory_space<vmem>>) attributes {dimension_semantics = [#tpu.dimension_semantics<arbitrary>], iteration_bounds = array<i64: 1>, scalar_prefetch = 0 : i64, scratch_operands = 0 : i64, tpu.core_type = #tpu.core_type<tc>, window_params = [{pipeline_mode = #tpu.pipeline_mode<synchronous>, transform_indices = @transform_0, window_bounds = array<i64: 16, 16>}, {pipeline_mode = #tpu.pipeline_mode<synchronous>, transform_indices = @transform_1, window_bounds = array<i64: 2, 8>}, {pipeline_mode = #tpu.pipeline_mode<synchronous>, transform_indices = @transform_2, window_bounds = array<i64: 32, 32>}, {pipeline_mode = #tpu.pipeline_mode<synchronous>, transform_indices = @transform_3, window_bounds = array<i64: 2, 32>}, {pipeline_mode = #tpu.pipeline_mode<synchronous>, transform_indices = @transform_4, window_bounds = array<i64: 16, 64>}, {pipeline_mode = #tpu.pipeline_mode<synchronous>, transform_indices = @transform_5, window_bounds = array<i64: 16, 64>}, {pipeline_mode = #tpu.pipeline_mode<synchronous>, transform_indices = @transform_6, window_bounds = array<i64: 1, 64>}, {pipeline_mode = #tpu.pipeline_mode<synchronous>, transform_indices = @transform_7, window_bounds = array<i64: 8, 32>}, {pipeline_mode = #tpu.pipeline_mode<synchronous>, transform_indices = @transform_8, window_bounds = array<i64: 8, 1>}, {pipeline_mode = #tpu.pipeline_mode<synchronous>, transform_indices = @transform_9, window_bounds = array<i64: 8, 16>}, {pipeline_mode = #tpu.pipeline_mode<synchronous>, transform_indices = @transform_10, window_bounds = array<i64: 2, 8>}, {pipeline_mode = #tpu.pipeline_mode<synchronous>, transform_indices = @transform_11, window_bounds = array<i64: 2, 1>}, {pipeline_mode = #tpu.pipeline_mode<synchronous>, transform_indices = @transform_12, window_bounds = array<i64: 64, 16>}, {pipeline_mode = #tpu.pipeline_mode<synchronous>, transform_indices = @transform_13, window_bounds = array<i64: 16, 16>}, {pipeline_mode = #tpu.pipeline_mode<synchronous>, transform_indices = @transform_14, window_bounds = array<i64: 1, 16>}, {pipeline_mode = #tpu.pipeline_mode<synchronous>, transform_indices = @transform_15, window_bounds = array<i64: 16, 128>}, {pipeline_mode = #tpu.pipeline_mode<synchronous>, transform_indices = @transform_16, window_bounds = array<i64: 1, 128>}, {pipeline_mode = #tpu.pipeline_mode<synchronous>, transform_indices = @transform_17, window_bounds = array<i64: 2, 128>}]} {
    %c0 = arith.constant 0 : index
    %c0_0 = arith.constant 0 : index
    %0 = vector.load %arg1[%c0, %c0_0] : memref<16x16xf32, #tpu.memory_space<vmem>>, vector<16x16xf32>
    %1 = math.tanh %0 : vector<16x16xf32>
    %c0_1 = arith.constant 0 : index
    %c0_2 = arith.constant 0 : index
    %2 = vector.load %arg5[%c0_1, %c0_2] : memref<16x64xf32, #tpu.memory_space<vmem>>, vector<16x64xf32>
    %cst = arith.constant dense<0.000000e+00> : vector<16x64xf32>
    %3 = tpu.matmul %1, %2, %cst {dimension_numbers = #tpu.dot_dimension_numbers<[1], [0], [0], [1], [0, 0, 1, 1], [], []>} : vector<16x16xf32>, vector<16x64xf32>, vector<16x64xf32> -> vector<16x64xf32>
    %c0_3 = arith.constant 0 : index
    %c0_4 = arith.constant 0 : index
    %4 = vector.load %arg7[%c0_3, %c0_4] : memref<1x64xf32, #tpu.memory_space<vmem>>, vector<1x64xf32>
    %5 = vector.broadcast %4 : vector<1x64xf32> to vector<16x64xf32>
    %6 = arith.addf %3, %5 : vector<16x64xf32>
    %c0_5 = arith.constant 0 : index
    %c0_6 = arith.constant 0 : index
    %7 = vector.load %arg6[%c0_5, %c0_6] : memref<16x64xf32, #tpu.memory_space<vmem>>, vector<16x64xf32>
    %c0_7 = arith.constant 0 : index
    %c0_8 = arith.constant 0 : index
    %8 = vector.load %arg2[%c0_7, %c0_8] : memref<2x8xf32, #tpu.memory_space<vmem>>, vector<2x8xf32>
    %cst_9 = arith.constant 0.000000e+00 : f32
    %9 = vector.broadcast %cst_9 : f32 to vector<2x16xf32>
    %cst_10 = arith.constant 0.000000e+00 : f32
    %10 = vector.broadcast %cst_10 : f32 to vector<2x16xf32>
    %11 = vector.extract_strided_slice %6 {offsets = [0, 0], sizes = [2, 64], strides = [1, 1]} : vector<16x64xf32> to vector<2x64xf32>
    %cst_11 = arith.constant dense<0.000000e+00> : vector<2x64xf32>
    %12 = tpu.matmul %9, %7, %cst_11 {dimension_numbers = #tpu.dot_dimension_numbers<[1], [0], [0], [1], [0, 0, 1, 1], [], []>} : vector<2x16xf32>, vector<16x64xf32>, vector<2x64xf32> -> vector<2x64xf32>
    %13 = arith.addf %11, %12 : vector<2x64xf32>
    %14 = vector.extract_strided_slice %13 {offsets = [0, 0], sizes = [2, 48], strides = [1, 1]} : vector<2x64xf32> to vector<2x48xf32>
    %15 = arith.negf %14 : vector<2x48xf32>
    %16 = math.exp %15 : vector<2x48xf32>
    %cst_12 = arith.constant 1.000000e+00 : f32
    %17 = vector.broadcast %cst_12 : f32 to vector<2x48xf32>
    %18 = arith.addf %17, %16 : vector<2x48xf32>
    %19 = arith.divf %17, %18 : vector<2x48xf32>
    %20 = vector.extract_strided_slice %13 {offsets = [0, 48], sizes = [2, 16], strides = [1, 1]} : vector<2x64xf32> to vector<2x16xf32>
    %21 = math.tanh %20 : vector<2x16xf32>
    %22 = vector.extract_strided_slice %19 {offsets = [0, 0], sizes = [2, 16], strides = [1, 1]} : vector<2x48xf32> to vector<2x16xf32>
    %23 = vector.extract_strided_slice %19 {offsets = [0, 16], sizes = [2, 16], strides = [1, 1]} : vector<2x48xf32> to vector<2x16xf32>
    %24 = vector.extract_strided_slice %19 {offsets = [0, 32], sizes = [2, 16], strides = [1, 1]} : vector<2x48xf32> to vector<2x16xf32>
    %25 = arith.mulf %23, %10 : vector<2x16xf32>
    %26 = arith.mulf %22, %21 : vector<2x16xf32>
    %27 = arith.addf %25, %26 : vector<2x16xf32>
    %28 = math.tanh %27 : vector<2x16xf32>
    %29 = arith.mulf %24, %28 : vector<2x16xf32>
    %30 = vector.extract_strided_slice %8 {offsets = [0, 0], sizes = [2, 1], strides = [1, 1]} : vector<2x8xf32> to vector<2x1xf32>
    %cst_13 = arith.constant 0.000000e+00 : f32
    %31 = vector.broadcast %cst_13 : f32 to vector<2x1xf32>
    %32 = arith.cmpf one, %30, %31 : vector<2x1xf32>
    %33 = vector.shape_cast %32 : vector<2x1xi1> to vector<2x1xi1>
    %34 = vector.broadcast %33 : vector<2x1xi1> to vector<2x16xi1>
    %35 = arith.select %34, %27, %10 : vector<2x16xi1>, vector<2x16xf32>
    %36 = vector.shape_cast %32 : vector<2x1xi1> to vector<2x1xi1>
    %37 = vector.broadcast %36 : vector<2x1xi1> to vector<2x16xi1>
    %38 = arith.select %37, %29, %9 : vector<2x16xi1>, vector<2x16xf32>
    %39 = vector.extract_strided_slice %6 {offsets = [2, 0], sizes = [2, 64], strides = [1, 1]} : vector<16x64xf32> to vector<2x64xf32>
    %cst_14 = arith.constant dense<0.000000e+00> : vector<2x64xf32>
    %40 = tpu.matmul %38, %7, %cst_14 {dimension_numbers = #tpu.dot_dimension_numbers<[1], [0], [0], [1], [0, 0, 1, 1], [], []>} : vector<2x16xf32>, vector<16x64xf32>, vector<2x64xf32> -> vector<2x64xf32>
    %41 = arith.addf %39, %40 : vector<2x64xf32>
    %42 = vector.extract_strided_slice %41 {offsets = [0, 0], sizes = [2, 48], strides = [1, 1]} : vector<2x64xf32> to vector<2x48xf32>
    %43 = arith.negf %42 : vector<2x48xf32>
    %44 = math.exp %43 : vector<2x48xf32>
    %cst_15 = arith.constant 1.000000e+00 : f32
    %45 = vector.broadcast %cst_15 : f32 to vector<2x48xf32>
    %46 = arith.addf %45, %44 : vector<2x48xf32>
    %47 = arith.divf %45, %46 : vector<2x48xf32>
    %48 = vector.extract_strided_slice %41 {offsets = [0, 48], sizes = [2, 16], strides = [1, 1]} : vector<2x64xf32> to vector<2x16xf32>
    %49 = math.tanh %48 : vector<2x16xf32>
    %50 = vector.extract_strided_slice %47 {offsets = [0, 0], sizes = [2, 16], strides = [1, 1]} : vector<2x48xf32> to vector<2x16xf32>
    %51 = vector.extract_strided_slice %47 {offsets = [0, 16], sizes = [2, 16], strides = [1, 1]} : vector<2x48xf32> to vector<2x16xf32>
    %52 = vector.extract_strided_slice %47 {offsets = [0, 32], sizes = [2, 16], strides = [1, 1]} : vector<2x48xf32> to vector<2x16xf32>
    %53 = arith.mulf %51, %35 : vector<2x16xf32>
    %54 = arith.mulf %50, %49 : vector<2x16xf32>
    %55 = arith.addf %53, %54 : vector<2x16xf32>
    %56 = math.tanh %55 : vector<2x16xf32>
    %57 = arith.mulf %52, %56 : vector<2x16xf32>
    %58 = vector.extract_strided_slice %8 {offsets = [0, 1], sizes = [2, 1], strides = [1, 1]} : vector<2x8xf32> to vector<2x1xf32>
    %cst_16 = arith.constant 0.000000e+00 : f32
    %59 = vector.broadcast %cst_16 : f32 to vector<2x1xf32>
    %60 = arith.cmpf one, %58, %59 : vector<2x1xf32>
    %61 = vector.shape_cast %60 : vector<2x1xi1> to vector<2x1xi1>
    %62 = vector.broadcast %61 : vector<2x1xi1> to vector<2x16xi1>
    %63 = arith.select %62, %55, %35 : vector<2x16xi1>, vector<2x16xf32>
    %64 = vector.shape_cast %60 : vector<2x1xi1> to vector<2x1xi1>
    %65 = vector.broadcast %64 : vector<2x1xi1> to vector<2x16xi1>
    %66 = arith.select %65, %57, %38 : vector<2x16xi1>, vector<2x16xf32>
    %67 = vector.extract_strided_slice %6 {offsets = [4, 0], sizes = [2, 64], strides = [1, 1]} : vector<16x64xf32> to vector<2x64xf32>
    %cst_17 = arith.constant dense<0.000000e+00> : vector<2x64xf32>
    %68 = tpu.matmul %66, %7, %cst_17 {dimension_numbers = #tpu.dot_dimension_numbers<[1], [0], [0], [1], [0, 0, 1, 1], [], []>} : vector<2x16xf32>, vector<16x64xf32>, vector<2x64xf32> -> vector<2x64xf32>
    %69 = arith.addf %67, %68 : vector<2x64xf32>
    %70 = vector.extract_strided_slice %69 {offsets = [0, 0], sizes = [2, 48], strides = [1, 1]} : vector<2x64xf32> to vector<2x48xf32>
    %71 = arith.negf %70 : vector<2x48xf32>
    %72 = math.exp %71 : vector<2x48xf32>
    %cst_18 = arith.constant 1.000000e+00 : f32
    %73 = vector.broadcast %cst_18 : f32 to vector<2x48xf32>
    %74 = arith.addf %73, %72 : vector<2x48xf32>
    %75 = arith.divf %73, %74 : vector<2x48xf32>
    %76 = vector.extract_strided_slice %69 {offsets = [0, 48], sizes = [2, 16], strides = [1, 1]} : vector<2x64xf32> to vector<2x16xf32>
    %77 = math.tanh %76 : vector<2x16xf32>
    %78 = vector.extract_strided_slice %75 {offsets = [0, 0], sizes = [2, 16], strides = [1, 1]} : vector<2x48xf32> to vector<2x16xf32>
    %79 = vector.extract_strided_slice %75 {offsets = [0, 16], sizes = [2, 16], strides = [1, 1]} : vector<2x48xf32> to vector<2x16xf32>
    %80 = vector.extract_strided_slice %75 {offsets = [0, 32], sizes = [2, 16], strides = [1, 1]} : vector<2x48xf32> to vector<2x16xf32>
    %81 = arith.mulf %79, %63 : vector<2x16xf32>
    %82 = arith.mulf %78, %77 : vector<2x16xf32>
    %83 = arith.addf %81, %82 : vector<2x16xf32>
    %84 = math.tanh %83 : vector<2x16xf32>
    %85 = arith.mulf %80, %84 : vector<2x16xf32>
    %86 = vector.extract_strided_slice %8 {offsets = [0, 2], sizes = [2, 1], strides = [1, 1]} : vector<2x8xf32> to vector<2x1xf32>
    %cst_19 = arith.constant 0.000000e+00 : f32
    %87 = vector.broadcast %cst_19 : f32 to vector<2x1xf32>
    %88 = arith.cmpf one, %86, %87 : vector<2x1xf32>
    %89 = vector.shape_cast %88 : vector<2x1xi1> to vector<2x1xi1>
    %90 = vector.broadcast %89 : vector<2x1xi1> to vector<2x16xi1>
    %91 = arith.select %90, %83, %63 : vector<2x16xi1>, vector<2x16xf32>
    %92 = vector.shape_cast %88 : vector<2x1xi1> to vector<2x1xi1>
    %93 = vector.broadcast %92 : vector<2x1xi1> to vector<2x16xi1>
    %94 = arith.select %93, %85, %66 : vector<2x16xi1>, vector<2x16xf32>
    %95 = vector.extract_strided_slice %6 {offsets = [6, 0], sizes = [2, 64], strides = [1, 1]} : vector<16x64xf32> to vector<2x64xf32>
    %cst_20 = arith.constant dense<0.000000e+00> : vector<2x64xf32>
    %96 = tpu.matmul %94, %7, %cst_20 {dimension_numbers = #tpu.dot_dimension_numbers<[1], [0], [0], [1], [0, 0, 1, 1], [], []>} : vector<2x16xf32>, vector<16x64xf32>, vector<2x64xf32> -> vector<2x64xf32>
    %97 = arith.addf %95, %96 : vector<2x64xf32>
    %98 = vector.extract_strided_slice %97 {offsets = [0, 0], sizes = [2, 48], strides = [1, 1]} : vector<2x64xf32> to vector<2x48xf32>
    %99 = arith.negf %98 : vector<2x48xf32>
    %100 = math.exp %99 : vector<2x48xf32>
    %cst_21 = arith.constant 1.000000e+00 : f32
    %101 = vector.broadcast %cst_21 : f32 to vector<2x48xf32>
    %102 = arith.addf %101, %100 : vector<2x48xf32>
    %103 = arith.divf %101, %102 : vector<2x48xf32>
    %104 = vector.extract_strided_slice %97 {offsets = [0, 48], sizes = [2, 16], strides = [1, 1]} : vector<2x64xf32> to vector<2x16xf32>
    %105 = math.tanh %104 : vector<2x16xf32>
    %106 = vector.extract_strided_slice %103 {offsets = [0, 0], sizes = [2, 16], strides = [1, 1]} : vector<2x48xf32> to vector<2x16xf32>
    %107 = vector.extract_strided_slice %103 {offsets = [0, 16], sizes = [2, 16], strides = [1, 1]} : vector<2x48xf32> to vector<2x16xf32>
    %108 = vector.extract_strided_slice %103 {offsets = [0, 32], sizes = [2, 16], strides = [1, 1]} : vector<2x48xf32> to vector<2x16xf32>
    %109 = arith.mulf %107, %91 : vector<2x16xf32>
    %110 = arith.mulf %106, %105 : vector<2x16xf32>
    %111 = arith.addf %109, %110 : vector<2x16xf32>
    %112 = math.tanh %111 : vector<2x16xf32>
    %113 = arith.mulf %108, %112 : vector<2x16xf32>
    %114 = vector.extract_strided_slice %8 {offsets = [0, 3], sizes = [2, 1], strides = [1, 1]} : vector<2x8xf32> to vector<2x1xf32>
    %cst_22 = arith.constant 0.000000e+00 : f32
    %115 = vector.broadcast %cst_22 : f32 to vector<2x1xf32>
    %116 = arith.cmpf one, %114, %115 : vector<2x1xf32>
    %117 = vector.shape_cast %116 : vector<2x1xi1> to vector<2x1xi1>
    %118 = vector.broadcast %117 : vector<2x1xi1> to vector<2x16xi1>
    %119 = arith.select %118, %111, %91 : vector<2x16xi1>, vector<2x16xf32>
    %120 = vector.shape_cast %116 : vector<2x1xi1> to vector<2x1xi1>
    %121 = vector.broadcast %120 : vector<2x1xi1> to vector<2x16xi1>
    %122 = arith.select %121, %113, %94 : vector<2x16xi1>, vector<2x16xf32>
    %123 = vector.extract_strided_slice %6 {offsets = [8, 0], sizes = [2, 64], strides = [1, 1]} : vector<16x64xf32> to vector<2x64xf32>
    %cst_23 = arith.constant dense<0.000000e+00> : vector<2x64xf32>
    %124 = tpu.matmul %122, %7, %cst_23 {dimension_numbers = #tpu.dot_dimension_numbers<[1], [0], [0], [1], [0, 0, 1, 1], [], []>} : vector<2x16xf32>, vector<16x64xf32>, vector<2x64xf32> -> vector<2x64xf32>
    %125 = arith.addf %123, %124 : vector<2x64xf32>
    %126 = vector.extract_strided_slice %125 {offsets = [0, 0], sizes = [2, 48], strides = [1, 1]} : vector<2x64xf32> to vector<2x48xf32>
    %127 = arith.negf %126 : vector<2x48xf32>
    %128 = math.exp %127 : vector<2x48xf32>
    %cst_24 = arith.constant 1.000000e+00 : f32
    %129 = vector.broadcast %cst_24 : f32 to vector<2x48xf32>
    %130 = arith.addf %129, %128 : vector<2x48xf32>
    %131 = arith.divf %129, %130 : vector<2x48xf32>
    %132 = vector.extract_strided_slice %125 {offsets = [0, 48], sizes = [2, 16], strides = [1, 1]} : vector<2x64xf32> to vector<2x16xf32>
    %133 = math.tanh %132 : vector<2x16xf32>
    %134 = vector.extract_strided_slice %131 {offsets = [0, 0], sizes = [2, 16], strides = [1, 1]} : vector<2x48xf32> to vector<2x16xf32>
    %135 = vector.extract_strided_slice %131 {offsets = [0, 16], sizes = [2, 16], strides = [1, 1]} : vector<2x48xf32> to vector<2x16xf32>
    %136 = vector.extract_strided_slice %131 {offsets = [0, 32], sizes = [2, 16], strides = [1, 1]} : vector<2x48xf32> to vector<2x16xf32>
    %137 = arith.mulf %135, %119 : vector<2x16xf32>
    %138 = arith.mulf %134, %133 : vector<2x16xf32>
    %139 = arith.addf %137, %138 : vector<2x16xf32>
    %140 = math.tanh %139 : vector<2x16xf32>
    %141 = arith.mulf %136, %140 : vector<2x16xf32>
    %142 = vector.extract_strided_slice %8 {offsets = [0, 4], sizes = [2, 1], strides = [1, 1]} : vector<2x8xf32> to vector<2x1xf32>
    %cst_25 = arith.constant 0.000000e+00 : f32
    %143 = vector.broadcast %cst_25 : f32 to vector<2x1xf32>
    %144 = arith.cmpf one, %142, %143 : vector<2x1xf32>
    %145 = vector.shape_cast %144 : vector<2x1xi1> to vector<2x1xi1>
    %146 = vector.broadcast %145 : vector<2x1xi1> to vector<2x16xi1>
    %147 = arith.select %146, %139, %119 : vector<2x16xi1>, vector<2x16xf32>
    %148 = vector.shape_cast %144 : vector<2x1xi1> to vector<2x1xi1>
    %149 = vector.broadcast %148 : vector<2x1xi1> to vector<2x16xi1>
    %150 = arith.select %149, %141, %122 : vector<2x16xi1>, vector<2x16xf32>
    %151 = vector.extract_strided_slice %6 {offsets = [10, 0], sizes = [2, 64], strides = [1, 1]} : vector<16x64xf32> to vector<2x64xf32>
    %cst_26 = arith.constant dense<0.000000e+00> : vector<2x64xf32>
    %152 = tpu.matmul %150, %7, %cst_26 {dimension_numbers = #tpu.dot_dimension_numbers<[1], [0], [0], [1], [0, 0, 1, 1], [], []>} : vector<2x16xf32>, vector<16x64xf32>, vector<2x64xf32> -> vector<2x64xf32>
    %153 = arith.addf %151, %152 : vector<2x64xf32>
    %154 = vector.extract_strided_slice %153 {offsets = [0, 0], sizes = [2, 48], strides = [1, 1]} : vector<2x64xf32> to vector<2x48xf32>
    %155 = arith.negf %154 : vector<2x48xf32>
    %156 = math.exp %155 : vector<2x48xf32>
    %cst_27 = arith.constant 1.000000e+00 : f32
    %157 = vector.broadcast %cst_27 : f32 to vector<2x48xf32>
    %158 = arith.addf %157, %156 : vector<2x48xf32>
    %159 = arith.divf %157, %158 : vector<2x48xf32>
    %160 = vector.extract_strided_slice %153 {offsets = [0, 48], sizes = [2, 16], strides = [1, 1]} : vector<2x64xf32> to vector<2x16xf32>
    %161 = math.tanh %160 : vector<2x16xf32>
    %162 = vector.extract_strided_slice %159 {offsets = [0, 0], sizes = [2, 16], strides = [1, 1]} : vector<2x48xf32> to vector<2x16xf32>
    %163 = vector.extract_strided_slice %159 {offsets = [0, 16], sizes = [2, 16], strides = [1, 1]} : vector<2x48xf32> to vector<2x16xf32>
    %164 = vector.extract_strided_slice %159 {offsets = [0, 32], sizes = [2, 16], strides = [1, 1]} : vector<2x48xf32> to vector<2x16xf32>
    %165 = arith.mulf %163, %147 : vector<2x16xf32>
    %166 = arith.mulf %162, %161 : vector<2x16xf32>
    %167 = arith.addf %165, %166 : vector<2x16xf32>
    %168 = math.tanh %167 : vector<2x16xf32>
    %169 = arith.mulf %164, %168 : vector<2x16xf32>
    %170 = vector.extract_strided_slice %8 {offsets = [0, 5], sizes = [2, 1], strides = [1, 1]} : vector<2x8xf32> to vector<2x1xf32>
    %cst_28 = arith.constant 0.000000e+00 : f32
    %171 = vector.broadcast %cst_28 : f32 to vector<2x1xf32>
    %172 = arith.cmpf one, %170, %171 : vector<2x1xf32>
    %173 = vector.shape_cast %172 : vector<2x1xi1> to vector<2x1xi1>
    %174 = vector.broadcast %173 : vector<2x1xi1> to vector<2x16xi1>
    %175 = arith.select %174, %167, %147 : vector<2x16xi1>, vector<2x16xf32>
    %176 = vector.shape_cast %172 : vector<2x1xi1> to vector<2x1xi1>
    %177 = vector.broadcast %176 : vector<2x1xi1> to vector<2x16xi1>
    %178 = arith.select %177, %169, %150 : vector<2x16xi1>, vector<2x16xf32>
    %179 = vector.extract_strided_slice %6 {offsets = [12, 0], sizes = [2, 64], strides = [1, 1]} : vector<16x64xf32> to vector<2x64xf32>
    %cst_29 = arith.constant dense<0.000000e+00> : vector<2x64xf32>
    %180 = tpu.matmul %178, %7, %cst_29 {dimension_numbers = #tpu.dot_dimension_numbers<[1], [0], [0], [1], [0, 0, 1, 1], [], []>} : vector<2x16xf32>, vector<16x64xf32>, vector<2x64xf32> -> vector<2x64xf32>
    %181 = arith.addf %179, %180 : vector<2x64xf32>
    %182 = vector.extract_strided_slice %181 {offsets = [0, 0], sizes = [2, 48], strides = [1, 1]} : vector<2x64xf32> to vector<2x48xf32>
    %183 = arith.negf %182 : vector<2x48xf32>
    %184 = math.exp %183 : vector<2x48xf32>
    %cst_30 = arith.constant 1.000000e+00 : f32
    %185 = vector.broadcast %cst_30 : f32 to vector<2x48xf32>
    %186 = arith.addf %185, %184 : vector<2x48xf32>
    %187 = arith.divf %185, %186 : vector<2x48xf32>
    %188 = vector.extract_strided_slice %181 {offsets = [0, 48], sizes = [2, 16], strides = [1, 1]} : vector<2x64xf32> to vector<2x16xf32>
    %189 = math.tanh %188 : vector<2x16xf32>
    %190 = vector.extract_strided_slice %187 {offsets = [0, 0], sizes = [2, 16], strides = [1, 1]} : vector<2x48xf32> to vector<2x16xf32>
    %191 = vector.extract_strided_slice %187 {offsets = [0, 16], sizes = [2, 16], strides = [1, 1]} : vector<2x48xf32> to vector<2x16xf32>
    %192 = vector.extract_strided_slice %187 {offsets = [0, 32], sizes = [2, 16], strides = [1, 1]} : vector<2x48xf32> to vector<2x16xf32>
    %193 = arith.mulf %191, %175 : vector<2x16xf32>
    %194 = arith.mulf %190, %189 : vector<2x16xf32>
    %195 = arith.addf %193, %194 : vector<2x16xf32>
    %196 = math.tanh %195 : vector<2x16xf32>
    %197 = arith.mulf %192, %196 : vector<2x16xf32>
    %198 = vector.extract_strided_slice %8 {offsets = [0, 6], sizes = [2, 1], strides = [1, 1]} : vector<2x8xf32> to vector<2x1xf32>
    %cst_31 = arith.constant 0.000000e+00 : f32
    %199 = vector.broadcast %cst_31 : f32 to vector<2x1xf32>
    %200 = arith.cmpf one, %198, %199 : vector<2x1xf32>
    %201 = vector.shape_cast %200 : vector<2x1xi1> to vector<2x1xi1>
    %202 = vector.broadcast %201 : vector<2x1xi1> to vector<2x16xi1>
    %203 = arith.select %202, %195, %175 : vector<2x16xi1>, vector<2x16xf32>
    %204 = vector.shape_cast %200 : vector<2x1xi1> to vector<2x1xi1>
    %205 = vector.broadcast %204 : vector<2x1xi1> to vector<2x16xi1>
    %206 = arith.select %205, %197, %178 : vector<2x16xi1>, vector<2x16xf32>
    %207 = vector.extract_strided_slice %6 {offsets = [14, 0], sizes = [2, 64], strides = [1, 1]} : vector<16x64xf32> to vector<2x64xf32>
    %cst_32 = arith.constant dense<0.000000e+00> : vector<2x64xf32>
    %208 = tpu.matmul %206, %7, %cst_32 {dimension_numbers = #tpu.dot_dimension_numbers<[1], [0], [0], [1], [0, 0, 1, 1], [], []>} : vector<2x16xf32>, vector<16x64xf32>, vector<2x64xf32> -> vector<2x64xf32>
    %209 = arith.addf %207, %208 : vector<2x64xf32>
    %210 = vector.extract_strided_slice %209 {offsets = [0, 0], sizes = [2, 48], strides = [1, 1]} : vector<2x64xf32> to vector<2x48xf32>
    %211 = arith.negf %210 : vector<2x48xf32>
    %212 = math.exp %211 : vector<2x48xf32>
    %cst_33 = arith.constant 1.000000e+00 : f32
    %213 = vector.broadcast %cst_33 : f32 to vector<2x48xf32>
    %214 = arith.addf %213, %212 : vector<2x48xf32>
    %215 = arith.divf %213, %214 : vector<2x48xf32>
    %216 = vector.extract_strided_slice %209 {offsets = [0, 48], sizes = [2, 16], strides = [1, 1]} : vector<2x64xf32> to vector<2x16xf32>
    %217 = math.tanh %216 : vector<2x16xf32>
    %218 = vector.extract_strided_slice %215 {offsets = [0, 0], sizes = [2, 16], strides = [1, 1]} : vector<2x48xf32> to vector<2x16xf32>
    %219 = vector.extract_strided_slice %215 {offsets = [0, 16], sizes = [2, 16], strides = [1, 1]} : vector<2x48xf32> to vector<2x16xf32>
    %220 = arith.mulf %219, %203 : vector<2x16xf32>
    %221 = arith.mulf %218, %217 : vector<2x16xf32>
    %222 = arith.addf %220, %221 : vector<2x16xf32>
    %223 = vector.extract_strided_slice %8 {offsets = [0, 7], sizes = [2, 1], strides = [1, 1]} : vector<2x8xf32> to vector<2x1xf32>
    %cst_34 = arith.constant 0.000000e+00 : f32
    %224 = vector.broadcast %cst_34 : f32 to vector<2x1xf32>
    %225 = arith.cmpf one, %223, %224 : vector<2x1xf32>
    %226 = vector.shape_cast %225 : vector<2x1xi1> to vector<2x1xi1>
    %227 = vector.broadcast %226 : vector<2x1xi1> to vector<2x16xi1>
    %228 = arith.select %227, %222, %203 : vector<2x16xi1>, vector<2x16xf32>
    %c0_35 = arith.constant 0 : index
    %c0_36 = arith.constant 0 : index
    %229 = vector.load %arg3[%c0_35, %c0_36] : memref<32x32xf32, #tpu.memory_space<vmem>>, vector<32x32xf32>
    %c0_37 = arith.constant 0 : index
    %c0_38 = arith.constant 0 : index
    %230 = vector.load %arg4[%c0_37, %c0_38] : memref<2x32xf32, #tpu.memory_space<vmem>>, vector<2x32xf32>
    %c0_39 = arith.constant 0 : index
    %c0_40 = arith.constant 0 : index
    %231 = vector.load %arg8[%c0_39, %c0_40] : memref<8x32xf32, #tpu.memory_space<vmem>>, vector<8x32xf32>
    %cst_41 = arith.constant dense<0.000000e+00> : vector<8x32xf32>
    %232 = tpu.matmul %231, %229, %cst_41 {dimension_numbers = #tpu.dot_dimension_numbers<[1], [0], [0], [1], [0, 0, 1, 1], [], []>} : vector<8x32xf32>, vector<32x32xf32>, vector<8x32xf32> -> vector<8x32xf32>
    %c0_42 = arith.constant 0 : index
    %c0_43 = arith.constant 0 : index
    %233 = vector.load %arg10[%c0_42, %c0_43] : memref<8x16xf32, #tpu.memory_space<vmem>>, vector<8x16xf32>
    %cst_44 = arith.constant dense<0.000000e+00> : vector<8x2xf32>
    %234 = tpu.matmul %233, %228, %cst_44 {dimension_numbers = #tpu.dot_dimension_numbers<[1], [1], [0], [0], [0, 0, 1, 0], [], []>} : vector<8x16xf32>, vector<2x16xf32>, vector<8x2xf32> -> vector<8x2xf32>
    %cst_45 = arith.constant dense<0.000000e+00> : vector<8x32xf32>
    %235 = tpu.matmul %234, %230, %cst_45 {dimension_numbers = #tpu.dot_dimension_numbers<[1], [0], [0], [1], [0, 0, 1, 1], [], []>} : vector<8x2xf32>, vector<2x32xf32>, vector<8x32xf32> -> vector<8x32xf32>
    %236 = arith.addf %232, %235 : vector<8x32xf32>
    %c0_46 = arith.constant 0 : index
    %c0_47 = arith.constant 0 : index
    %237 = vector.load %arg9[%c0_46, %c0_47] : memref<8x1xf32, #tpu.memory_space<vmem>>, vector<8x1xf32>
    %238 = vector.broadcast %237 : vector<8x1xf32> to vector<8x32xf32>
    %239 = arith.addf %236, %238 : vector<8x32xf32>
    %cst_48 = arith.constant 0.000000e+00 : f32
    %240 = vector.broadcast %cst_48 : f32 to vector<8x32xf32>
    %241 = arith.maximumf %239, %240 : vector<8x32xf32>
    %c0_49 = arith.constant 0 : index
    %c0_50 = arith.constant 0 : index
    %242 = vector.load %arg11[%c0_49, %c0_50] : memref<2x8xf32, #tpu.memory_space<vmem>>, vector<2x8xf32>
    %cst_51 = arith.constant dense<0.000000e+00> : vector<2x32xf32>
    %243 = tpu.matmul %242, %241, %cst_51 {dimension_numbers = #tpu.dot_dimension_numbers<[1], [0], [0], [1], [0, 0, 1, 1], [], []>} : vector<2x8xf32>, vector<8x32xf32>, vector<2x32xf32> -> vector<2x32xf32>
    %c0_52 = arith.constant 0 : index
    %c0_53 = arith.constant 0 : index
    %244 = vector.load %arg12[%c0_52, %c0_53] : memref<2x1xf32, #tpu.memory_space<vmem>>, vector<2x1xf32>
    %245 = vector.broadcast %244 : vector<2x1xf32> to vector<2x32xf32>
    %246 = arith.addf %243, %245 : vector<2x32xf32>
    %cst_54 = arith.constant 0.000000e+00 : f32
    %247 = vector.broadcast %cst_54 : f32 to vector<2x32xf32>
    %248 = vector.extract_strided_slice %246 {offsets = [0, 0], sizes = [2, 16], strides = [1, 1]} : vector<2x32xf32> to vector<2x16xf32>
    %cst_55 = arith.constant dense<0xFF800000> : vector<2xf32>
    %249 = vector.multi_reduction <maximumf>, %248, %cst_55 [1] : vector<2x16xf32> to vector<2xf32>
    %250 = vector.shape_cast %249 : vector<2xf32> to vector<2x1xf32>
    %251 = vector.extract_strided_slice %230 {offsets = [0, 0], sizes = [1, 32], strides = [1, 1]} : vector<2x32xf32> to vector<1x32xf32>
    %252 = vector.broadcast %250 : vector<2x1xf32> to vector<2x32xf32>
    %253 = vector.broadcast %251 : vector<1x32xf32> to vector<2x32xf32>
    %254 = arith.mulf %252, %253 : vector<2x32xf32>
    %255 = arith.addf %247, %254 : vector<2x32xf32>
    %256 = vector.extract_strided_slice %246 {offsets = [0, 16], sizes = [2, 16], strides = [1, 1]} : vector<2x32xf32> to vector<2x16xf32>
    %cst_56 = arith.constant dense<0xFF800000> : vector<2xf32>
    %257 = vector.multi_reduction <maximumf>, %256, %cst_56 [1] : vector<2x16xf32> to vector<2xf32>
    %258 = vector.shape_cast %257 : vector<2xf32> to vector<2x1xf32>
    %259 = vector.extract_strided_slice %230 {offsets = [1, 0], sizes = [1, 32], strides = [1, 1]} : vector<2x32xf32> to vector<1x32xf32>
    %260 = vector.broadcast %258 : vector<2x1xf32> to vector<2x32xf32>
    %261 = vector.broadcast %259 : vector<1x32xf32> to vector<2x32xf32>
    %262 = arith.mulf %260, %261 : vector<2x32xf32>
    %263 = arith.addf %255, %262 : vector<2x32xf32>
    %264 = arith.subf %246, %263 : vector<2x32xf32>
    %265 = math.exp %264 : vector<2x32xf32>
    %cst_57 = arith.constant dense<0.000000e+00> : vector<2x2xf32>
    %266 = tpu.matmul %265, %230, %cst_57 {dimension_numbers = #tpu.dot_dimension_numbers<[1], [1], [0], [0], [0, 0, 1, 0], [], []>} : vector<2x32xf32>, vector<2x32xf32>, vector<2x2xf32> -> vector<2x2xf32>
    %cst_58 = arith.constant dense<0.000000e+00> : vector<2x32xf32>
    %267 = tpu.matmul %266, %230, %cst_58 {dimension_numbers = #tpu.dot_dimension_numbers<[1], [0], [0], [1], [0, 0, 1, 1], [], []>} : vector<2x2xf32>, vector<2x32xf32>, vector<2x32xf32> -> vector<2x32xf32>
    %268 = tpu.reciprocal %267 {approx = true} : vector<2x32xf32> -> vector<2x32xf32>
    %269 = arith.mulf %265, %268 : vector<2x32xf32>
    %c0_59 = arith.constant 0 : index
    %c0_60 = arith.constant 0 : index
    %270 = vector.load %arg14[%c0_59, %c0_60] : memref<16x16xf32, #tpu.memory_space<vmem>>, vector<16x16xf32>
    %cst_61 = arith.constant dense<0.000000e+00> : vector<2x16xf32>
    %271 = tpu.matmul %228, %270, %cst_61 {dimension_numbers = #tpu.dot_dimension_numbers<[1], [0], [0], [1], [0, 0, 1, 1], [], []>} : vector<2x16xf32>, vector<16x16xf32>, vector<2x16xf32> -> vector<2x16xf32>
    %c0_62 = arith.constant 0 : index
    %c0_63 = arith.constant 0 : index
    %272 = vector.load %arg15[%c0_62, %c0_63] : memref<1x16xf32, #tpu.memory_space<vmem>>, vector<1x16xf32>
    %273 = vector.broadcast %272 : vector<1x16xf32> to vector<2x16xf32>
    %274 = arith.addf %271, %273 : vector<2x16xf32>
    %275 = vector.extract_strided_slice %269 {offsets = [0, 0], sizes = [1, 32], strides = [1, 1]} : vector<2x32xf32> to vector<1x32xf32>
    %276 = vector.broadcast %275 : vector<1x32xf32> to vector<32x32xf32>
    %277 = arith.mulf %229, %276 : vector<32x32xf32>
    %cst_64 = arith.constant dense<0.000000e+00> : vector<2x32xf32>
    %278 = tpu.matmul %230, %277, %cst_64 {dimension_numbers = #tpu.dot_dimension_numbers<[1], [1], [0], [0], [0, 0, 1, 0], [], []>} : vector<2x32xf32>, vector<32x32xf32>, vector<2x32xf32> -> vector<2x32xf32>
    %c0_65 = arith.constant 0 : index
    %c0_66 = arith.constant 0 : index
    %279 = vector.load %arg13[%c0_65, %c0_66] : memref<64x16xf32, #tpu.memory_space<vmem>>, vector<32x16xf32>
    %cst_67 = arith.constant dense<0.000000e+00> : vector<2x16xf32>
    %280 = tpu.matmul %278, %279, %cst_67 {dimension_numbers = #tpu.dot_dimension_numbers<[1], [0], [0], [1], [0, 0, 1, 1], [], []>} : vector<2x32xf32>, vector<32x16xf32>, vector<2x16xf32> -> vector<2x16xf32>
    %281 = arith.addf %274, %280 : vector<2x16xf32>
    %282 = vector.extract_strided_slice %269 {offsets = [1, 0], sizes = [1, 32], strides = [1, 1]} : vector<2x32xf32> to vector<1x32xf32>
    %283 = vector.broadcast %282 : vector<1x32xf32> to vector<32x32xf32>
    %284 = arith.mulf %229, %283 : vector<32x32xf32>
    %cst_68 = arith.constant dense<0.000000e+00> : vector<2x32xf32>
    %285 = tpu.matmul %230, %284, %cst_68 {dimension_numbers = #tpu.dot_dimension_numbers<[1], [1], [0], [0], [0, 0, 1, 0], [], []>} : vector<2x32xf32>, vector<32x32xf32>, vector<2x32xf32> -> vector<2x32xf32>
    %c32 = arith.constant 32 : index
    %c0_69 = arith.constant 0 : index
    %286 = vector.load %arg13[%c32, %c0_69] : memref<64x16xf32, #tpu.memory_space<vmem>>, vector<32x16xf32>
    %cst_70 = arith.constant dense<0.000000e+00> : vector<2x16xf32>
    %287 = tpu.matmul %285, %286, %cst_70 {dimension_numbers = #tpu.dot_dimension_numbers<[1], [0], [0], [1], [0, 0, 1, 1], [], []>} : vector<2x32xf32>, vector<32x16xf32>, vector<2x16xf32> -> vector<2x16xf32>
    %288 = arith.addf %281, %287 : vector<2x16xf32>
    %cst_71 = arith.constant 0.000000e+00 : f32
    %289 = vector.broadcast %cst_71 : f32 to vector<2x16xf32>
    %290 = arith.maximumf %288, %289 : vector<2x16xf32>
    %c0_72 = arith.constant 0 : index
    %c0_73 = arith.constant 0 : index
    %291 = vector.load %arg16[%c0_72, %c0_73] : memref<16x128xf32, #tpu.memory_space<vmem>>, vector<16x128xf32>
    %cst_74 = arith.constant dense<0.000000e+00> : vector<2x128xf32>
    %292 = tpu.matmul %290, %291, %cst_74 {dimension_numbers = #tpu.dot_dimension_numbers<[1], [0], [0], [1], [0, 0, 1, 1], [], []>} : vector<2x16xf32>, vector<16x128xf32>, vector<2x128xf32> -> vector<2x128xf32>
    %c0_75 = arith.constant 0 : index
    %c0_76 = arith.constant 0 : index
    %293 = vector.load %arg17[%c0_75, %c0_76] : memref<1x128xf32, #tpu.memory_space<vmem>>, vector<1x128xf32>
    %294 = vector.broadcast %293 : vector<1x128xf32> to vector<2x128xf32>
    %295 = arith.addf %292, %294 : vector<2x128xf32>
    %c0_77 = arith.constant 0 : index
    %c0_78 = arith.constant 0 : index
    %296 = vector.load %arg18[%c0_77, %c0_78] : memref<2x128xf32, #tpu.memory_space<vmem>>, vector<2x128xf32>
    tpu.vector_store %arg18[%c0_77, %c0_78], %295 {strides = array<i32>} : memref<2x128xf32, #tpu.memory_space<vmem>>, vector<2x128xf32>,
    return
  }
  func.func @transform_0(%arg0: i32) -> (i32, i32) {
    %c0_i32 = arith.constant 0 : i32
    %c0_i32_0 = arith.constant 0 : i32
    %c0_i32_1 = arith.constant 0 : i32
    return %c0_i32, %c0_i32_0 : i32, i32
  }
  func.func @transform_1(%arg0: i32) -> (i32, i32) {
    %c0_i32 = arith.constant 0 : i32
    %c0_i32_0 = arith.constant 0 : i32
    %c0_i32_1 = arith.constant 0 : i32
    return %c0_i32, %c0_i32_0 : i32, i32
  }
  func.func @transform_2(%arg0: i32) -> (i32, i32) {
    %c0_i32 = arith.constant 0 : i32
    %c0_i32_0 = arith.constant 0 : i32
    %c0_i32_1 = arith.constant 0 : i32
    return %c0_i32, %c0_i32_0 : i32, i32
  }
  func.func @transform_3(%arg0: i32) -> (i32, i32) {
    %c0_i32 = arith.constant 0 : i32
    %c0_i32_0 = arith.constant 0 : i32
    %c0_i32_1 = arith.constant 0 : i32
    return %c0_i32, %c0_i32_0 : i32, i32
  }
  func.func @transform_4(%arg0: i32) -> (i32, i32) {
    %c0_i32 = arith.constant 0 : i32
    %c0_i32_0 = arith.constant 0 : i32
    %c0_i32_1 = arith.constant 0 : i32
    return %c0_i32, %c0_i32_0 : i32, i32
  }
  func.func @transform_5(%arg0: i32) -> (i32, i32) {
    %c0_i32 = arith.constant 0 : i32
    %c0_i32_0 = arith.constant 0 : i32
    %c0_i32_1 = arith.constant 0 : i32
    return %c0_i32, %c0_i32_0 : i32, i32
  }
  func.func @transform_6(%arg0: i32) -> (i32, i32) {
    %c0_i32 = arith.constant 0 : i32
    %c0_i32_0 = arith.constant 0 : i32
    %c0_i32_1 = arith.constant 0 : i32
    return %c0_i32, %c0_i32_0 : i32, i32
  }
  func.func @transform_7(%arg0: i32) -> (i32, i32) {
    %c0_i32 = arith.constant 0 : i32
    %c0_i32_0 = arith.constant 0 : i32
    %c0_i32_1 = arith.constant 0 : i32
    return %c0_i32, %c0_i32_0 : i32, i32
  }
  func.func @transform_8(%arg0: i32) -> (i32, i32) {
    %c0_i32 = arith.constant 0 : i32
    %c0_i32_0 = arith.constant 0 : i32
    %c0_i32_1 = arith.constant 0 : i32
    return %c0_i32, %c0_i32_0 : i32, i32
  }
  func.func @transform_9(%arg0: i32) -> (i32, i32) {
    %c0_i32 = arith.constant 0 : i32
    %c0_i32_0 = arith.constant 0 : i32
    %c0_i32_1 = arith.constant 0 : i32
    return %c0_i32, %c0_i32_0 : i32, i32
  }
  func.func @transform_10(%arg0: i32) -> (i32, i32) {
    %c0_i32 = arith.constant 0 : i32
    %c0_i32_0 = arith.constant 0 : i32
    %c0_i32_1 = arith.constant 0 : i32
    return %c0_i32, %c0_i32_0 : i32, i32
  }
  func.func @transform_11(%arg0: i32) -> (i32, i32) {
    %c0_i32 = arith.constant 0 : i32
    %c0_i32_0 = arith.constant 0 : i32
    %c0_i32_1 = arith.constant 0 : i32
    return %c0_i32, %c0_i32_0 : i32, i32
  }
  func.func @transform_12(%arg0: i32) -> (i32, i32) {
    %c0_i32 = arith.constant 0 : i32
    %c0_i32_0 = arith.constant 0 : i32
    %c0_i32_1 = arith.constant 0 : i32
    return %c0_i32, %c0_i32_0 : i32, i32
  }
  func.func @transform_13(%arg0: i32) -> (i32, i32) {
    %c0_i32 = arith.constant 0 : i32
    %c0_i32_0 = arith.constant 0 : i32
    %c0_i32_1 = arith.constant 0 : i32
    return %c0_i32, %c0_i32_0 : i32, i32
  }
  func.func @transform_14(%arg0: i32) -> (i32, i32) {
    %c0_i32 = arith.constant 0 : i32
    %c0_i32_0 = arith.constant 0 : i32
    %c0_i32_1 = arith.constant 0 : i32
    return %c0_i32, %c0_i32_0 : i32, i32
  }
  func.func @transform_15(%arg0: i32) -> (i32, i32) {
    %c0_i32 = arith.constant 0 : i32
    %c0_i32_0 = arith.constant 0 : i32
    %c0_i32_1 = arith.constant 0 : i32
    return %c0_i32, %c0_i32_0 : i32, i32
  }
  func.func @transform_16(%arg0: i32) -> (i32, i32) {
    %c0_i32 = arith.constant 0 : i32
    %c0_i32_0 = arith.constant 0 : i32
    %c0_i32_1 = arith.constant 0 : i32
    return %c0_i32, %c0_i32_0 : i32, i32
  }
  func.func @transform_17(%arg0: i32) -> (i32, i32) {
    %c0_i32 = arith.constant 0 : i32
    %c0_i32_0 = arith.constant 0 : i32
    %c0_i32_1 = arith.constant 0 : i32
    return %c0_i32, %c0_i32_0 : i32, i32
  }
}

</mosaic_0001>

<llo_original>
// kernel: tpu_custom_call.1
$region0: #{tpu_custom_call.1}
  #allocation0 [shape = 'u32[]', space=smem, size = 0x4, offset = 0x4, fixed_abs, tag = 'smem constant byte address 0x4 - core index']
  #allocation1 [shape = 'u32[144,128]{1,0:T(1,128)}', space=vmem, size = 0x12000, scoped, tag = 'internal scratch']
  %s0 = inlined_call_operand.vmem [shape: f32[16,16], index: 0, kind: input, shape index: {}]
  %s1 = inlined_call_operand.hbm [shape: f32[2,8], index: 1, kind: input, shape index: {}]
  %s2 = inlined_call_operand.vmem [shape: f32[32,32], index: 2, kind: input, shape index: {}]
  %s3 = inlined_call_operand.hbm [shape: f32[2,32], index: 3, kind: input, shape index: {}]
  %s4 = inlined_call_operand.vmem [shape: f32[16,64], index: 4, kind: input, shape index: {}]
  %s5 = inlined_call_operand.vmem [shape: f32[16,64], index: 5, kind: input, shape index: {}]
  %s6 = inlined_call_operand.hbm [shape: f32[1,64], index: 6, kind: input, shape index: {}]
  %s7 = inlined_call_operand.hbm [shape: f32[8,32], index: 7, kind: input, shape index: {}]
  %s8 = inlined_call_operand.vmem [shape: f32[8,1], index: 8, kind: input, shape index: {}]
  %s9 = inlined_call_operand.hbm [shape: f32[8,16], index: 9, kind: input, shape index: {}]
  %s10 = inlined_call_operand.hbm [shape: f32[2,8], index: 10, kind: input, shape index: {}]
  %s11 = inlined_call_operand.vmem [shape: f32[2,1], index: 11, kind: input, shape index: {}]
  %s12 = inlined_call_operand.vmem [shape: f32[64,16], index: 12, kind: input, shape index: {}]
  %s13 = inlined_call_operand.vmem [shape: f32[16,16], index: 13, kind: input, shape index: {}]
  %s14 = inlined_call_operand.vmem [shape: f32[1,16], index: 14, kind: input, shape index: {}]
  %s15 = inlined_call_operand.vmem [shape: f32[16,128], index: 15, kind: input, shape index: {}]
  %s16 = inlined_call_operand.vmem [shape: f32[1,128], index: 16, kind: input, shape index: {}]
  %s17 = inlined_call_operand.hbm [shape: f32[2,128], index: 17, kind: output, shape index: {}]
  %s18 = sld [smem:[#allocation0]]
  $region102: #{tpu_custom_call.1} parent=0
    _
  %s20 = ssub.s32 1, %s18
  %s21 = scalar_select 0, %s20, %s18
  $region1: #{tpu_custom_call.1} parent=0
    #allocation2 [shape = 'u8[1024]{0}', space=vmem, size = 0x400, scoped, tag = 'input window, operand 1, single buffered']
    #allocation3 [shape = 's32[1]{0}', space=sflag, size = 0x4, scoped, tag = 'scoped memory for tpu_custom_call.1']
    #allocation4 [shape = 's32[1]{0}', space=sflag, size = 0x4, scoped, tag = 'scoped memory for tpu_custom_call.1']
    #allocation5 [shape = 'u8[1024]{0}', space=vmem, size = 0x400, scoped, tag = 'input window, operand 3, single buffered']
    #allocation6 [shape = 's32[1]{0}', space=sflag, size = 0x4, scoped, tag = 'scoped memory for tpu_custom_call.1']
    #allocation7 [shape = 'u8[512]{0}', space=vmem, size = 0x400, scoped, tag = 'input window, operand 6, single buffered']
    #allocation8 [shape = 'u8[4096]{0}', space=vmem, size = 0x1000, scoped, tag = 'input window, operand 7, single buffered']
    #allocation9 [shape = 's32[1]{0}', space=sflag, size = 0x4, scoped, tag = 'scoped memory for tpu_custom_call.1']
    #allocation10 [shape = 'u8[4096]{0}', space=vmem, size = 0x1000, scoped, tag = 'input window, operand 9, single buffered']
    #allocation11 [shape = 'u8[1024]{0}', space=vmem, size = 0x400, scoped, tag = 'input window, operand 10, single buffered']
    #allocation12 [shape = 's32[1]{0}', space=sflag, size = 0x4, scoped, tag = 'scoped memory for tpu_custom_call.1']
    #allocation13 [shape = 'u8[1024]{0}', space=vmem, size = 0x400, scoped, tag = 'output window, operand 0, single buffered']
    %22 = vsyncpa [#allocation3], 0
    %23 = vsyncpa [#allocation6], 0
    %24 = vsyncpa [#allocation9], 0
    %25 = vsyncpa [#allocation12], 0
    %26 = vsyncpa [#allocation4], 0
    // Predicated region
    $region2: #{tpu_custom_call.1} parent=1 // pred_check
      _
    $region3: #{tpu_custom_call.1} parent=1 // pred_check_branch
      %28 = sbr.rel (0) target = $region5
    $region4: #{tpu_custom_call.1} parent=1 // pred_region
      _
    $region5: #{tpu_custom_call.1} parent=1 // pred_fallthru
      _
    // Predicated region
    $region6: #{tpu_custom_call.1} parent=1 // pred_check
      _
    $region7: #{tpu_custom_call.1} parent=1 // pred_check_branch
      %30 = sbr.rel (0) target = $region9
    $region8: #{tpu_custom_call.1} parent=1 // pred_region
      %s32 = ssub.s32 32, 32
      %33 = vsyncadd [#allocation3], %s32
      %s35 = sshll.u32 [#allocation2], 4
      %s36 = int_to_ptr.vmem [resolvable:$true] %s35
      %38 = dma.hbm_to_vmem [thread:$0]  %s1, 32, %s36, [#allocation3]
    $region9: #{tpu_custom_call.1} parent=1 // pred_fallthru
      _
    // Predicated region
    $region10: #{tpu_custom_call.1} parent=1 // pred_check
      _
    $region11: #{tpu_custom_call.1} parent=1 // pred_check_branch
      %40 = sbr.rel (0) target = $region13
    $region12: #{tpu_custom_call.1} parent=1 // pred_region
      _
    $region13: #{tpu_custom_call.1} parent=1 // pred_fallthru
      _
    // Predicated region
    $region14: #{tpu_custom_call.1} parent=1 // pred_check
      _
    $region15: #{tpu_custom_call.1} parent=1 // pred_check_branch
      %42 = sbr.rel (0) target = $region17
    $region16: #{tpu_custom_call.1} parent=1 // pred_region
      %s44 = ssub.s32 32, 32
      %45 = vsyncadd [#allocation6], %s44
      %s47 = sshll.u32 [#allocation5], 4
      %s48 = int_to_ptr.vmem [resolvable:$true] %s47
      %50 = dma.hbm_to_vmem [thread:$0]  %s3, 32, %s48, [#allocation6]
    $region17: #{tpu_custom_call.1} parent=1 // pred_fallthru
      _
    // Predicated region
    $region18: #{tpu_custom_call.1} parent=1 // pred_check
      _
    $region19: #{tpu_custom_call.1} parent=1 // pred_check_branch
      %52 = sbr.rel (0) target = $region21
    $region20: #{tpu_custom_call.1} parent=1 // pred_region
      _
    $region21: #{tpu_custom_call.1} parent=1 // pred_fallthru
      _
    // Predicated region
    $region22: #{tpu_custom_call.1} parent=1 // pred_check
      _
    $region23: #{tpu_custom_call.1} parent=1 // pred_check_branch
      %54 = sbr.rel (0) target = $region25
    $region24: #{tpu_custom_call.1} parent=1 // pred_region
      _
    $region25: #{tpu_custom_call.1} parent=1 // pred_fallthru
      _
    // Predicated region
    $region26: #{tpu_custom_call.1} parent=1 // pred_check
      _
    $region27: #{tpu_custom_call.1} parent=1 // pred_check_branch
      %56 = sbr.rel (0) target = $region29
    $region28: #{tpu_custom_call.1} parent=1 // pred_region
      %s58 = ssub.s32 16, 16
      %59 = vsyncadd [#allocation6], %s58
      %s61 = sshll.u32 [#allocation7], 4
      %s62 = int_to_ptr.vmem [resolvable:$true] %s61
      %64 = dma.hbm_to_vmem [thread:$0]  %s6, 16, %s62, [#allocation6]
    $region29: #{tpu_custom_call.1} parent=1 // pred_fallthru
      _
    // Predicated region
    $region30: #{tpu_custom_call.1} parent=1 // pred_check
      _
    $region31: #{tpu_custom_call.1} parent=1 // pred_check_branch
      %66 = sbr.rel (0) target = $region33
    $region32: #{tpu_custom_call.1} parent=1 // pred_region
      %s68 = ssub.s32 128, 128
      %69 = vsyncadd [#allocation9], %s68
      %s71 = sshll.u32 [#allocation8], 4
      %s72 = int_to_ptr.vmem [resolvable:$true] %s71
      %74 = dma.hbm_to_vmem [thread:$0]  %s7, 128, %s72, [#allocation9]
    $region33: #{tpu_custom_call.1} parent=1 // pred_fallthru
      _
    // Predicated region
    $region34: #{tpu_custom_call.1} parent=1 // pred_check
      _
    $region35: #{tpu_custom_call.1} parent=1 // pred_check_branch
      %76 = sbr.rel (0) target = $region37
    $region36: #{tpu_custom_call.1} parent=1 // pred_region
      _
    $region37: #{tpu_custom_call.1} parent=1 // pred_fallthru
      _
    // Predicated region
    $region38: #{tpu_custom_call.1} parent=1 // pred_check
      _
    $region39: #{tpu_custom_call.1} parent=1 // pred_check_branch
      %78 = sbr.rel (0) target = $region41
    $region40: #{tpu_custom_call.1} parent=1 // pred_region
      %s80 = ssub.s32 128, 128
      %81 = vsyncadd [#allocation9], %s80
      %s83 = sshll.u32 [#allocation10], 4
      %s84 = int_to_ptr.vmem [resolvable:$true] %s83
      %86 = dma.hbm_to_vmem [thread:$0]  %s9, 128, %s84, [#allocation9]
    $region41: #{tpu_custom_call.1} parent=1 // pred_fallthru
      _
    // Predicated region
    $region42: #{tpu_custom_call.1} parent=1 // pred_check
      _
    $region43: #{tpu_custom_call.1} parent=1 // pred_check_branch
      %88 = sbr.rel (0) target = $region45
    $region44: #{tpu_custom_call.1} parent=1 // pred_region
      %s90 = ssub.s32 32, 32
      %91 = vsyncadd [#allocation12], %s90
      %s93 = sshll.u32 [#allocation11], 4
      %s94 = int_to_ptr.vmem [resolvable:$true] %s93
      %96 = dma.hbm_to_vmem [thread:$0]  %s10, 32, %s94, [#allocation12]
    $region45: #{tpu_custom_call.1} parent=1 // pred_fallthru
      _
    // Predicated region
    $region46: #{tpu_custom_call.1} parent=1 // pred_check
      _
    $region47: #{tpu_custom_call.1} parent=1 // pred_check_branch
      %98 = sbr.rel (0) target = $region49
    $region48: #{tpu_custom_call.1} parent=1 // pred_region
      _
    $region49: #{tpu_custom_call.1} parent=1 // pred_fallthru
      _
    // Predicated region
    $region50: #{tpu_custom_call.1} parent=1 // pred_check
      _
    $region51: #{tpu_custom_call.1} parent=1 // pred_check_branch
      %100 = sbr.rel (0) target = $region53
    $region52: #{tpu_custom_call.1} parent=1 // pred_region
      _
    $region53: #{tpu_custom_call.1} parent=1 // pred_fallthru
      _
    // Predicated region
    $region54: #{tpu_custom_call.1} parent=1 // pred_check
      _
    $region55: #{tpu_custom_call.1} parent=1 // pred_check_branch
      %102 = sbr.rel (0) target = $region57
    $region56: #{tpu_custom_call.1} parent=1 // pred_region
      _
    $region57: #{tpu_custom_call.1} parent=1 // pred_fallthru
      _
    // Predicated region
    $region58: #{tpu_custom_call.1} parent=1 // pred_check
      _
    $region59: #{tpu_custom_call.1} parent=1 // pred_check_branch
      %104 = sbr.rel (0) target = $region61
    $region60: #{tpu_custom_call.1} parent=1 // pred_region
      _
    $region61: #{tpu_custom_call.1} parent=1 // pred_fallthru
      _
    // Predicated region
    $region62: #{tpu_custom_call.1} parent=1 // pred_check
      _
    $region63: #{tpu_custom_call.1} parent=1 // pred_check_branch
      %106 = sbr.rel (0) target = $region65
    $region64: #{tpu_custom_call.1} parent=1 // pred_region
      _
    $region65: #{tpu_custom_call.1} parent=1 // pred_fallthru
      _
    // Predicated region
    $region66: #{tpu_custom_call.1} parent=1 // pred_check
      _
    $region67: #{tpu_custom_call.1} parent=1 // pred_check_branch
      %108 = sbr.rel (0) target = $region69
    $region68: #{tpu_custom_call.1} parent=1 // pred_region
      _
    $region69: #{tpu_custom_call.1} parent=1 // pred_fallthru
      _
    // Predicated region
    $region70: #{tpu_custom_call.1} parent=1 // pred_check
      _
    $region71: #{tpu_custom_call.1} parent=1 // pred_check_branch
      %110 = sbr.rel (0) target = $region73
    $region72: #{tpu_custom_call.1} parent=1 // pred_region
      %111 = dma.done [#allocation3], 32
    $region73: #{tpu_custom_call.1} parent=1 // pred_fallthru
      _
    // Predicated region
    $region74: #{tpu_custom_call.1} parent=1 // pred_check
      _
    $region75: #{tpu_custom_call.1} parent=1 // pred_check_branch
      %113 = sbr.rel (0) target = $region77
    $region76: #{tpu_custom_call.1} parent=1 // pred_region
      %114 = dma.done [#allocation6], 32
    $region77: #{tpu_custom_call.1} parent=1 // pred_fallthru
      _
    // Predicated region
    $region78: #{tpu_custom_call.1} parent=1 // pred_check
      _
    $region79: #{tpu_custom_call.1} parent=1 // pred_check_branch
      %116 = sbr.rel (0) target = $region81
    $region80: #{tpu_custom_call.1} parent=1 // pred_region
      %117 = dma.done [#allocation6], 16
    $region81: #{tpu_custom_call.1} parent=1 // pred_fallthru
      _
    // Predicated region
    $region82: #{tpu_custom_call.1} parent=1 // pred_check
      _
    $region83: #{tpu_custom_call.1} parent=1 // pred_check_branch
      %119 = sbr.rel (0) target = $region85
    $region84: #{tpu_custom_call.1} parent=1 // pred_region
      %120 = dma.done [#allocation9], 128
    $region85: #{tpu_custom_call.1} parent=1 // pred_fallthru
      _
    // Predicated region
    $region86: #{tpu_custom_call.1} parent=1 // pred_check
      _
    $region87: #{tpu_custom_call.1} parent=1 // pred_check_branch
      %122 = sbr.rel (0) target = $region89
    $region88: #{tpu_custom_call.1} parent=1 // pred_region
      %123 = dma.done [#allocation9], 128
    $region89: #{tpu_custom_call.1} parent=1 // pred_fallthru
      _
    // Predicated region
    $region90: #{tpu_custom_call.1} parent=1 // pred_check
      _
    $region91: #{tpu_custom_call.1} parent=1 // pred_check_branch
      %125 = sbr.rel (0) target = $region93
    $region92: #{tpu_custom_call.1} parent=1 // pred_region
      %126 = dma.done [#allocation12], 32
    $region93: #{tpu_custom_call.1} parent=1 // pred_fallthru
      _
    %v127 = vld [vmem:[%s0] sm:$0xff]
    %v128 = vld [vmem:[%s0 + $0x8] sm:$0xff]
    %v129 = vtanh.pop %v127
    %v130 = vtanh.pop %v128
    %v131 = vld [vmem:[%s4] sm:$0xff]
    %v132 = vld [vmem:[%s4 + $0x8] sm:$0xff]
    %v133 = vld [vmem:[#allocation7] sm:$0x1]
    %v135 = vlaneseq
    %v136 = vshrl.u32 %v135, 7
    %v137 = vsub.s32 0, %v136
    %v138 = vrot.slane %v133, %v137
    %vm140 = vcmask 130048
    %v142 = vsel %vm140, %v129, 0
    %v145 = vsel %vm140, %v130, 0
    %147 = vmatprep.subr.mxu0 0.0
    %148 = vmatpush1.msra.mxu0 0.0
    %149 = vmatprep.subr.mxu0 0.0
    %150 = vmatpush1.msra.mxu0 0.0
    %151 = vmatprep.subr.mxu0 0.0
    %152 = vmatpush1.msra.mxu0 0.0
    %153 = vmatprep.subr.mxu0 0.0
    %154 = vmatpush1.msra.mxu0 0.0
    %155 = vmatprep.subr.mxu0 0.0
    %156 = vmatpush1.msra.mxu0 0.0
    %157 = vmatprep.subr.mxu0 0.0
    %158 = vmatpush1.msra.mxu0 0.0
    %159 = vmatprep.subr.mxu0 0.0
    %160 = vmatpush1.msra.mxu0 0.0
    %161 = vmatprep.subr.mxu0 0.0
    %162 = vmatpush1.msra.mxu0 0.0
    %163 = vmatprep.subr.mxu0 0.0
    %164 = vmatpush1.msra.mxu0 0.0
    %165 = vmatprep.subr.mxu0 0.0
    %166 = vmatpush1.msra.mxu0 0.0
    %167 = vmatprep.subr.mxu0 0.0
    %168 = vmatpush1.msra.mxu0 0.0
    %169 = vmatprep.subr.mxu0 0.0
    %170 = vmatpush1.msra.mxu0 0.0
    %171 = vmatprep.subr.mxu0 0.0
    %172 = vmatpush1.msra.mxu0 0.0
    %173 = vmatprep.subr.mxu0 0.0
    %174 = vmatpush1.msra.mxu0 0.0
    %175 = vmatprep.subr.mxu0 0.0
    %176 = vmatpush1.msra.mxu0 %v132
    %177 = vmatprep.subr.mxu0 0.0
    %178 = vmatpush1.msra.mxu0 %v131
    %179 = vmatprep.subr.mxu0 0.0
    %180 = vmatpush2.msra.mxu0 0.0
    %181 = vmatprep.subr.mxu0 0.0
    %182 = vmatpush2.msra.mxu0 0.0
    %183 = vmatprep.subr.mxu0 0.0
    %184 = vmatpush2.msra.mxu0 0.0
    %185 = vmatprep.subr.mxu0 0.0
    %186 = vmatpush2.msra.mxu0 0.0
    %187 = vmatprep.subr.mxu0 0.0
    %188 = vmatpush2.msra.mxu0 0.0
    %189 = vmatprep.subr.mxu0 0.0
    %190 = vmatpush2.msra.mxu0 0.0
    %191 = vmatprep.subr.mxu0 0.0
    %192 = vmatpush2.msra.mxu0 0.0
    %193 = vmatprep.subr.mxu0 0.0
    %194 = vmatpush2.msra.mxu0 0.0
    %195 = vmatprep.subr.mxu0 0.0
    %196 = vmatpush2.msra.mxu0 0.0
    %197 = vmatprep.subr.mxu0 0.0
    %198 = vmatpush2.msra.mxu0 0.0
    %199 = vmatprep.subr.mxu0 0.0
    %200 = vmatpush2.msra.mxu0 0.0
    %201 = vmatprep.subr.mxu0 0.0
    %202 = vmatpush2.msra.mxu0 0.0
    %203 = vmatprep.subr.mxu0 0.0
    %204 = vmatpush2.msra.mxu0 0.0
    %205 = vmatprep.subr.mxu0 0.0
    %206 = vmatpush2.msra.mxu0 0.0
    %207 = vmatprep.subr.mxu0 0.0
    %208 = vmatpush2.msra.mxu0 0.0
    %209 = vmatprep.subr.mxu0 0.0
    %210 = vmatpush2.msra.mxu0 0.0
    %211 = vmatprep.mubr.f32.mxu0 0.0
    %212 = vmatmul.mubr.f32.gmra.mxu0 %v142
    %v213 = vpop.f32.mrf.mxu0
    %v214 = vadd.f32 %v138, %v213
    %v215 = vpop.f32.mrf.mxu0
    %216 = vmatprep.mubr.f32.mxu0 0.0
    %217 = vmatmul.mubr.f32.gmra.mxu0 %v145
    %v218 = vpop.f32.mrf.mxu0
    %v219 = vadd.f32 %v138, %v218
    %v220 = vpop.f32.mrf.mxu0
    %221 = vdwg.mxu0
    %v222 = vld [vmem:[%s5] sm:$0xff]
    %v223 = vld [vmem:[%s5 + $0x8] sm:$0xff]
    %v224 = vld [vmem:[#allocation2] sm:$0x3]
    %v226 = vsel %vm140, 0.0, 0
    %228 = vmatprep.subr.mxu0 0.0
    %229 = vmatpush1.msra.mxu0 0.0
    %230 = vmatprep.subr.mxu0 0.0
    %231 = vmatpush1.msra.mxu0 0.0
    %232 = vmatprep.subr.mxu0 0.0
    %233 = vmatpush1.msra.mxu0 0.0
    %234 = vmatprep.subr.mxu0 0.0
    %235 = vmatpush1.msra.mxu0 0.0
    %236 = vmatprep.subr.mxu0 0.0
    %237 = vmatpush1.msra.mxu0 0.0
    %238 = vmatprep.subr.mxu0 0.0
    %239 = vmatpush1.msra.mxu0 0.0
    %240 = vmatprep.subr.mxu0 0.0
    %241 = vmatpush1.msra.mxu0 0.0
    %242 = vmatprep.subr.mxu0 0.0
    %243 = vmatpush1.msra.mxu0 0.0
    %244 = vmatprep.subr.mxu0 0.0
    %245 = vmatpush1.msra.mxu0 0.0
    %246 = vmatprep.subr.mxu0 0.0
    %247 = vmatpush1.msra.mxu0 0.0
    %248 = vmatprep.subr.mxu0 0.0
    %249 = vmatpush1.msra.mxu0 0.0
    %250 = vmatprep.subr.mxu0 0.0
    %251 = vmatpush1.msra.mxu0 0.0
    %252 = vmatprep.subr.mxu0 0.0
    %253 = vmatpush1.msra.mxu0 0.0
    %254 = vmatprep.subr.mxu0 0.0
    %255 = vmatpush1.msra.mxu0 0.0
    %256 = vmatprep.subr.mxu0 0.0
    %257 = vmatpush1.msra.mxu0 %v223
    %258 = vmatprep.subr.mxu0 0.0
    %259 = vmatpush1.msra.mxu0 %v222
    %260 = vmatprep.subr.mxu0 0.0
    %261 = vmatpush2.msra.mxu0 0.0
    %262 = vmatprep.subr.mxu0 0.0
    %263 = vmatpush2.msra.mxu0 0.0
    %264 = vmatprep.subr.mxu0 0.0
    %265 = vmatpush2.msra.mxu0 0.0
    %266 = vmatprep.subr.mxu0 0.0
    %267 = vmatpush2.msra.mxu0 0.0
    %268 = vmatprep.subr.mxu0 0.0
    %269 = vmatpush2.msra.mxu0 0.0
    %270 = vmatprep.subr.mxu0 0.0
    %271 = vmatpush2.msra.mxu0 0.0
    %272 = vmatprep.subr.mxu0 0.0
    %273 = vmatpush2.msra.mxu0 0.0
    %274 = vmatprep.subr.mxu0 0.0
    %275 = vmatpush2.msra.mxu0 0.0
    %276 = vmatprep.subr.mxu0 0.0
    %277 = vmatpush2.msra.mxu0 0.0
    %278 = vmatprep.subr.mxu0 0.0
    %279 = vmatpush2.msra.mxu0 0.0
    %280 = vmatprep.subr.mxu0 0.0
    %281 = vmatpush2.msra.mxu0 0.0
    %282 = vmatprep.subr.mxu0 0.0
    %283 = vmatpush2.msra.mxu0 0.0
    %284 = vmatprep.subr.mxu0 0.0
    %285 = vmatpush2.msra.mxu0 0.0
    %286 = vmatprep.subr.mxu0 0.0
    %287 = vmatpush2.msra.mxu0 0.0
    %288 = vmatprep.subr.mxu0 0.0
    %289 = vmatpush2.msra.mxu0 0.0
    %290 = vmatprep.subr.mxu0 0.0
    %291 = vmatpush2.msra.mxu0 0.0
    %292 = vmatprep.mubr.f32.mxu0 0.0
    %293 = vmatmul.mubr.f32.gmra.mxu0 %v226
    %v294 = vpop.f32.mrf.mxu0
    %v295 = vadd.f32 0.0, %v294
    %v296 = vpop.f32.mrf.mxu0
    %297 = vdwg.mxu0
    %v298 = vadd.f32 %v214, %v295
    %v299 = vxor.u32 %v298, 2147483648
    %v300 = vmul.f32 %v299, 1.442695
    %v301 = vpow.pop %v300
    %v302 = vadd.f32 %v301, 1.0
    %v303 = vrcp.pop %v302
    %v304 = vmul.f32 1.0, %v303
    %v305 = vtanh.pop %v298
    %v306 = vmul.f32 %v304, 0.0
    %308 = vrot.lane.b32.xlu0 %v305, 80
    %v309 = vpop.permute.xlu0 %308
    %v311 = vmul.f32 %v304, %v309
    %313 = vrot.lane.b32.xlu0 %v311, 16
    %v314 = vpop.permute.xlu0 %313
    %v316 = vadd.f32 %v306, %v314
    %v317 = vtanh.pop %v316
    %319 = vrot.lane.b32.xlu0 %v317, 16
    %v320 = vpop.permute.xlu0 %319
    %v322 = vmul.f32 %v304, %v320
    %vm323 = vcmp.ne.f32.partialorder %v224, 0.0
    %v324 = vsel %vm323, 1, 0
    %325 = vset.pattern.permute.xlu0 0
    %326 = vperm.xlu0 %325, %v324
    %v327 = vpop.permute.xlu0 %326
    %vm328 = vcmp.eq.s32.totalorder %v327, 1
    %v329 = vsel %vm328, %v316, 0.0
    %v330 = vsel %vm328, %v322, 0.0
    %332 = vrot.lane.b32.xlu0 %v330, 96
    %v333 = vpop.permute.xlu0 %332
    %v334 = vsel %vm140, %v333, 0
    %336 = vmatprep.subr.mxu0 0.0
    %337 = vmatpush1.msra.mxu0 0.0
    %338 = vmatprep.subr.mxu0 0.0
    %339 = vmatpush1.msra.mxu0 0.0
    %340 = vmatprep.subr.mxu0 0.0
    %341 = vmatpush1.msra.mxu0 0.0
    %342 = vmatprep.subr.mxu0 0.0
    %343 = vmatpush1.msra.mxu0 0.0
    %344 = vmatprep.subr.mxu0 0.0
    %345 = vmatpush1.msra.mxu0 0.0
    %346 = vmatprep.subr.mxu0 0.0
    %347 = vmatpush1.msra.mxu0 0.0
    %348 = vmatprep.subr.mxu0 0.0
    %349 = vmatpush1.msra.mxu0 0.0
    %350 = vmatprep.subr.mxu0 0.0
    %351 = vmatpush1.msra.mxu0 0.0
    %352 = vmatprep.subr.mxu0 0.0
    %353 = vmatpush1.msra.mxu0 0.0
    %354 = vmatprep.subr.mxu0 0.0
    %355 = vmatpush1.msra.mxu0 0.0
    %356 = vmatprep.subr.mxu0 0.0
    %357 = vmatpush1.msra.mxu0 0.0
    %358 = vmatprep.subr.mxu0 0.0
    %359 = vmatpush1.msra.mxu0 0.0
    %360 = vmatprep.subr.mxu0 0.0
    %361 = vmatpush1.msra.mxu0 0.0
    %362 = vmatprep.subr.mxu0 0.0
    %363 = vmatpush1.msra.mxu0 0.0
    %364 = vmatprep.subr.mxu0 0.0
    %365 = vmatpush1.msra.mxu0 %v223
    %366 = vmatprep.subr.mxu0 0.0
    %367 = vmatpush1.msra.mxu0 %v222
    %368 = vmatprep.subr.mxu0 0.0
    %369 = vmatpush2.msra.mxu0 0.0
    %370 = vmatprep.subr.mxu0 0.0
    %371 = vmatpush2.msra.mxu0 0.0
    %372 = vmatprep.subr.mxu0 0.0
    %373 = vmatpush2.msra.mxu0 0.0
    %374 = vmatprep.subr.mxu0 0.0
    %375 = vmatpush2.msra.mxu0 0.0
    %376 = vmatprep.subr.mxu0 0.0
    %377 = vmatpush2.msra.mxu0 0.0
    %378 = vmatprep.subr.mxu0 0.0
    %379 = vmatpush2.msra.mxu0 0.0
    %380 = vmatprep.subr.mxu0 0.0
    %381 = vmatpush2.msra.mxu0 0.0
    %382 = vmatprep.subr.mxu0 0.0
    %383 = vmatpush2.msra.mxu0 0.0
    %384 = vmatprep.subr.mxu0 0.0
    %385 = vmatpush2.msra.mxu0 0.0
    %386 = vmatprep.subr.mxu0 0.0
    %387 = vmatpush2.msra.mxu0 0.0
    %388 = vmatprep.subr.mxu0 0.0
    %389 = vmatpush2.msra.mxu0 0.0
    %390 = vmatprep.subr.mxu0 0.0
    %391 = vmatpush2.msra.mxu0 0.0
    %392 = vmatprep.subr.mxu0 0.0
    %393 = vmatpush2.msra.mxu0 0.0
    %394 = vmatprep.subr.mxu0 0.0
    %395 = vmatpush2.msra.mxu0 0.0
    %396 = vmatprep.subr.mxu0 0.0
    %397 = vmatpush2.msra.mxu0 0.0
    %398 = vmatprep.subr.mxu0 0.0
    %399 = vmatpush2.msra.mxu0 0.0
    %400 = vmatprep.mubr.f32.mxu0 0.0
    %401 = vmatmul.mubr.f32.gmra.mxu0 %v334
    %v402 = vpop.f32.mrf.mxu0
    %v403 = vadd.f32 0.0, %v402
    %v404 = vpop.f32.mrf.mxu0
    %405 = vdwg.mxu0
    %v407 = vrot.slane %v403, 6
    %v409 = vadd.f32 %v214, %v407
    %v410 = vxor.u32 %v409, 2147483648
    %v411 = vmul.f32 %v410, 1.442695
    %v412 = vpow.pop %v411
    %v413 = vadd.f32 %v412, 1.0
    %v414 = vrcp.pop %v413
    %v415 = vmul.f32 1.0, %v414
    %v416 = vtanh.pop %v409
    %v418 = vrot.slane %v329, 6
    %v420 = vmul.f32 %v415, %v418
    %422 = vrot.lane.b32.xlu0 %v416, 80
    %v423 = vpop.permute.xlu0 %422
    %v425 = vmul.f32 %v415, %v423
    %427 = vrot.lane.b32.xlu0 %v425, 16
    %v428 = vpop.permute.xlu0 %427
    %v430 = vadd.f32 %v420, %v428
    %v431 = vtanh.pop %v430
    %433 = vrot.lane.b32.xlu0 %v431, 16
    %v434 = vpop.permute.xlu0 %433
    %v436 = vmul.f32 %v415, %v434
    %437 = vset.pattern.permute.xlu0 1
    %438 = vperm.xlu0 %437, %v324
    %v439 = vpop.permute.xlu0 %438
    %vm440 = vcmp.eq.s32.totalorder %v439, 1
    %v442 = vrot.slane %v430, 2
    %443 = vrot.lane.b32.xlu0 %v442, 112
    %v444 = vpop.permute.xlu0 %443
    %446 = vrot.lane.b32.xlu0 %v329, 112
    %v447 = vpop.permute.xlu0 %446
    %v449 = vsel %vm440, %v444, %v447
    %v451 = vrot.slane %v436, 2
    %452 = vrot.lane.b32.xlu0 %v451, 96
    %v453 = vpop.permute.xlu0 %452
    %v456 = vsel %vm440, %v453, %v333
    %v458 = vsel %vm140, %v456, 0
    %460 = vmatprep.subr.mxu0 0.0
    %461 = vmatpush1.msra.mxu0 0.0
    %462 = vmatprep.subr.mxu0 0.0
    %463 = vmatpush1.msra.mxu0 0.0
    %464 = vmatprep.subr.mxu0 0.0
    %465 = vmatpush1.msra.mxu0 0.0
    %466 = vmatprep.subr.mxu0 0.0
    %467 = vmatpush1.msra.mxu0 0.0
    %468 = vmatprep.subr.mxu0 0.0
    %469 = vmatpush1.msra.mxu0 0.0
    %470 = vmatprep.subr.mxu0 0.0
    %471 = vmatpush1.msra.mxu0 0.0
    %472 = vmatprep.subr.mxu0 0.0
    %473 = vmatpush1.msra.mxu0 0.0
    %474 = vmatprep.subr.mxu0 0.0
    %475 = vmatpush1.msra.mxu0 0.0
    %476 = vmatprep.subr.mxu0 0.0
    %477 = vmatpush1.msra.mxu0 0.0
    %478 = vmatprep.subr.mxu0 0.0
    %479 = vmatpush1.msra.mxu0 0.0
    %480 = vmatprep.subr.mxu0 0.0
    %481 = vmatpush1.msra.mxu0 0.0
    %482 = vmatprep.subr.mxu0 0.0
    %483 = vmatpush1.msra.mxu0 0.0
    %484 = vmatprep.subr.mxu0 0.0
    %485 = vmatpush1.msra.mxu0 0.0
    %486 = vmatprep.subr.mxu0 0.0
    %487 = vmatpush1.msra.mxu0 0.0
    %488 = vmatprep.subr.mxu0 0.0
    %489 = vmatpush1.msra.mxu0 %v223
    %490 = vmatprep.subr.mxu0 0.0
    %491 = vmatpush1.msra.mxu0 %v222
    %492 = vmatprep.subr.mxu0 0.0
    %493 = vmatpush2.msra.mxu0 0.0
    %494 = vmatprep.subr.mxu0 0.0
    %495 = vmatpush2.msra.mxu0 0.0
    %496 = vmatprep.subr.mxu0 0.0
    %497 = vmatpush2.msra.mxu0 0.0
    %498 = vmatprep.subr.mxu0 0.0
    %499 = vmatpush2.msra.mxu0 0.0
    %500 = vmatprep.subr.mxu0 0.0
    %501 = vmatpush2.msra.mxu0 0.0
    %502 = vmatprep.subr.mxu0 0.0
    %503 = vmatpush2.msra.mxu0 0.0
    %504 = vmatprep.subr.mxu0 0.0
    %505 = vmatpush2.msra.mxu0 0.0
    %506 = vmatprep.subr.mxu0 0.0
    %507 = vmatpush2.msra.mxu0 0.0
    %508 = vmatprep.subr.mxu0 0.0
    %509 = vmatpush2.msra.mxu0 0.0
    %510 = vmatprep.subr.mxu0 0.0
    %511 = vmatpush2.msra.mxu0 0.0
    %512 = vmatprep.subr.mxu0 0.0
    %513 = vmatpush2.msra.mxu0 0.0
    %514 = vmatprep.subr.mxu0 0.0
    %515 = vmatpush2.msra.mxu0 0.0
    %516 = vmatprep.subr.mxu0 0.0
    %517 = vmatpush2.msra.mxu0 0.0
    %518 = vmatprep.subr.mxu0 0.0
    %519 = vmatpush2.msra.mxu0 0.0
    %520 = vmatprep.subr.mxu0 0.0
    %521 = vmatpush2.msra.mxu0 0.0
    %522 = vmatprep.subr.mxu0 0.0
    %523 = vmatpush2.msra.mxu0 0.0
    %524 = vmatprep.mubr.f32.mxu0 0.0
    %525 = vmatmul.mubr.f32.gmra.mxu0 %v458
    %v526 = vpop.f32.mrf.mxu0
    %v527 = vadd.f32 0.0, %v526
    %v528 = vpop.f32.mrf.mxu0
    %529 = vdwg.mxu0
    %v531 = vrot.slane %v527, 4
    %v533 = vadd.f32 %v214, %v531
    %v534 = vxor.u32 %v533, 2147483648
    %v535 = vmul.f32 %v534, 1.442695
    %v536 = vpow.pop %v535
    %v537 = vadd.f32 %v536, 1.0
    %v538 = vrcp.pop %v537
    %v539 = vmul.f32 1.0, %v538
    %v540 = vtanh.pop %v533
    %v542 = vrot.slane %v449, 4
    %543 = vrot.lane.b32.xlu0 %v542, 16
    %v544 = vpop.permute.xlu0 %543
    %v546 = vmul.f32 %v539, %v544
    %548 = vrot.lane.b32.xlu0 %v540, 80
    %v549 = vpop.permute.xlu0 %548
    %v551 = vmul.f32 %v539, %v549
    %553 = vrot.lane.b32.xlu0 %v551, 16
    %v554 = vpop.permute.xlu0 %553
    %v556 = vadd.f32 %v546, %v554
    %v557 = vtanh.pop %v556
    %559 = vrot.lane.b32.xlu0 %v557, 16
    %v560 = vpop.permute.xlu0 %559
    %v562 = vmul.f32 %v539, %v560
    %563 = vset.pattern.permute.xlu0 2
    %564 = vperm.xlu0 %563, %v324
    %v565 = vpop.permute.xlu0 %564
    %vm566 = vcmp.eq.s32.totalorder %v565, 1
    %v568 = vrot.slane %v556, 4
    %569 = vrot.lane.b32.xlu0 %v568, 112
    %v570 = vpop.permute.xlu0 %569
    %v572 = vsel %vm566, %v570, %v449
    %v574 = vrot.slane %v562, 4
    %575 = vrot.lane.b32.xlu0 %v574, 96
    %v576 = vpop.permute.xlu0 %575
    %v578 = vsel %vm566, %v576, %v456
    %v580 = vsel %vm140, %v578, 0
    %582 = vmatprep.subr.mxu0 0.0
    %583 = vmatpush1.msra.mxu0 0.0
    %584 = vmatprep.subr.mxu0 0.0
    %585 = vmatpush1.msra.mxu0 0.0
    %586 = vmatprep.subr.mxu0 0.0
    %587 = vmatpush1.msra.mxu0 0.0
    %588 = vmatprep.subr.mxu0 0.0
    %589 = vmatpush1.msra.mxu0 0.0
    %590 = vmatprep.subr.mxu0 0.0
    %591 = vmatpush1.msra.mxu0 0.0
    %592 = vmatprep.subr.mxu0 0.0
    %593 = vmatpush1.msra.mxu0 0.0
    %594 = vmatprep.subr.mxu0 0.0
    %595 = vmatpush1.msra.mxu0 0.0
    %596 = vmatprep.subr.mxu0 0.0
    %597 = vmatpush1.msra.mxu0 0.0
    %598 = vmatprep.subr.mxu0 0.0
    %599 = vmatpush1.msra.mxu0 0.0
    %600 = vmatprep.subr.mxu0 0.0
    %601 = vmatpush1.msra.mxu0 0.0
    %602 = vmatprep.subr.mxu0 0.0
    %603 = vmatpush1.msra.mxu0 0.0
    %604 = vmatprep.subr.mxu0 0.0
    %605 = vmatpush1.msra.mxu0 0.0
    %606 = vmatprep.subr.mxu0 0.0
    %607 = vmatpush1.msra.mxu0 0.0
    %608 = vmatprep.subr.mxu0 0.0
    %609 = vmatpush1.msra.mxu0 0.0
    %610 = vmatprep.subr.mxu0 0.0
    %611 = vmatpush1.msra.mxu0 %v223
    %612 = vmatprep.subr.mxu0 0.0
    %613 = vmatpush1.msra.mxu0 %v222
    %614 = vmatprep.subr.mxu0 0.0
    %615 = vmatpush2.msra.mxu0 0.0
    %616 = vmatprep.subr.mxu0 0.0
    %617 = vmatpush2.msra.mxu0 0.0
    %618 = vmatprep.subr.mxu0 0.0
    %619 = vmatpush2.msra.mxu0 0.0
    %620 = vmatprep.subr.mxu0 0.0
    %621 = vmatpush2.msra.mxu0 0.0
    %622 = vmatprep.subr.mxu0 0.0
    %623 = vmatpush2.msra.mxu0 0.0
    %624 = vmatprep.subr.mxu0 0.0
    %625 = vmatpush2.msra.mxu0 0.0
    %626 = vmatprep.subr.mxu0 0.0
    %627 = vmatpush2.msra.mxu0 0.0
    %628 = vmatprep.subr.mxu0 0.0
    %629 = vmatpush2.msra.mxu0 0.0
    %630 = vmatprep.subr.mxu0 0.0
    %631 = vmatpush2.msra.mxu0 0.0
    %632 = vmatprep.subr.mxu0 0.0
    %633 = vmatpush2.msra.mxu0 0.0
    %634 = vmatprep.subr.mxu0 0.0
    %635 = vmatpush2.msra.mxu0 0.0
    %636 = vmatprep.subr.mxu0 0.0
    %637 = vmatpush2.msra.mxu0 0.0
    %638 = vmatprep.subr.mxu0 0.0
    %639 = vmatpush2.msra.mxu0 0.0
    %640 = vmatprep.subr.mxu0 0.0
    %641 = vmatpush2.msra.mxu0 0.0
    %642 = vmatprep.subr.mxu0 0.0
    %643 = vmatpush2.msra.mxu0 0.0
    %644 = vmatprep.subr.mxu0 0.0
    %645 = vmatpush2.msra.mxu0 0.0
    %646 = vmatprep.mubr.f32.mxu0 0.0
    %647 = vmatmul.mubr.f32.gmra.mxu0 %v580
    %v648 = vpop.f32.mrf.mxu0
    %v649 = vadd.f32 0.0, %v648
    %v650 = vpop.f32.mrf.mxu0
    %651 = vdwg.mxu0
    %v653 = vrot.slane %v649, 2
    %v655 = vadd.f32 %v214, %v653
    %v656 = vxor.u32 %v655, 2147483648
    %v657 = vmul.f32 %v656, 1.442695
    %v658 = vpow.pop %v657
    %v659 = vadd.f32 %v658, 1.0
    %v660 = vrcp.pop %v659
    %v661 = vmul.f32 1.0, %v660
    %v662 = vtanh.pop %v655
    %v664 = vrot.slane %v572, 2
    %665 = vrot.lane.b32.xlu0 %v664, 16
    %v666 = vpop.permute.xlu0 %665
    %v668 = vmul.f32 %v661, %v666
    %670 = vrot.lane.b32.xlu0 %v662, 80
    %v671 = vpop.permute.xlu0 %670
    %v673 = vmul.f32 %v661, %v671
    %675 = vrot.lane.b32.xlu0 %v673, 16
    %v676 = vpop.permute.xlu0 %675
    %v678 = vadd.f32 %v668, %v676
    %v679 = vtanh.pop %v678
    %681 = vrot.lane.b32.xlu0 %v679, 16
    %v682 = vpop.permute.xlu0 %681
    %v684 = vmul.f32 %v661, %v682
    %685 = vset.pattern.permute.xlu0 3
    %686 = vperm.xlu0 %685, %v324
    %v687 = vpop.permute.xlu0 %686
    %vm688 = vcmp.eq.s32.totalorder %v687, 1
    %v690 = vrot.slane %v678, 6
    %691 = vrot.lane.b32.xlu0 %v690, 112
    %v692 = vpop.permute.xlu0 %691
    %v694 = vsel %vm688, %v692, %v572
    %v696 = vrot.slane %v684, 6
    %697 = vrot.lane.b32.xlu0 %v696, 96
    %v698 = vpop.permute.xlu0 %697
    %v700 = vsel %vm688, %v698, %v578
    %v702 = vsel %vm140, %v700, 0
    %704 = vmatprep.subr.mxu0 0.0
    %705 = vmatpush1.msra.mxu0 0.0
    %706 = vmatprep.subr.mxu0 0.0
    %707 = vmatpush1.msra.mxu0 0.0
    %708 = vmatprep.subr.mxu0 0.0
    %709 = vmatpush1.msra.mxu0 0.0
    %710 = vmatprep.subr.mxu0 0.0
    %711 = vmatpush1.msra.mxu0 0.0
    %712 = vmatprep.subr.mxu0 0.0
    %713 = vmatpush1.msra.mxu0 0.0
    %714 = vmatprep.subr.mxu0 0.0
    %715 = vmatpush1.msra.mxu0 0.0
    %716 = vmatprep.subr.mxu0 0.0
    %717 = vmatpush1.msra.mxu0 0.0
    %718 = vmatprep.subr.mxu0 0.0
    %719 = vmatpush1.msra.mxu0 0.0
    %720 = vmatprep.subr.mxu0 0.0
    %721 = vmatpush1.msra.mxu0 0.0
    %722 = vmatprep.subr.mxu0 0.0
    %723 = vmatpush1.msra.mxu0 0.0
    %724 = vmatprep.subr.mxu0 0.0
    %725 = vmatpush1.msra.mxu0 0.0
    %726 = vmatprep.subr.mxu0 0.0
    %727 = vmatpush1.msra.mxu0 0.0
    %728 = vmatprep.subr.mxu0 0.0
    %729 = vmatpush1.msra.mxu0 0.0
    %730 = vmatprep.subr.mxu0 0.0
    %731 = vmatpush1.msra.mxu0 0.0
    %732 = vmatprep.subr.mxu0 0.0
    %733 = vmatpush1.msra.mxu0 %v223
    %734 = vmatprep.subr.mxu0 0.0
    %735 = vmatpush1.msra.mxu0 %v222
    %736 = vmatprep.subr.mxu0 0.0
    %737 = vmatpush2.msra.mxu0 0.0
    %738 = vmatprep.subr.mxu0 0.0
    %739 = vmatpush2.msra.mxu0 0.0
    %740 = vmatprep.subr.mxu0 0.0
    %741 = vmatpush2.msra.mxu0 0.0
    %742 = vmatprep.subr.mxu0 0.0
    %743 = vmatpush2.msra.mxu0 0.0
    %744 = vmatprep.subr.mxu0 0.0
    %745 = vmatpush2.msra.mxu0 0.0
    %746 = vmatprep.subr.mxu0 0.0
    %747 = vmatpush2.msra.mxu0 0.0
    %748 = vmatprep.subr.mxu0 0.0
    %749 = vmatpush2.msra.mxu0 0.0
    %750 = vmatprep.subr.mxu0 0.0
    %751 = vmatpush2.msra.mxu0 0.0
    %752 = vmatprep.subr.mxu0 0.0
    %753 = vmatpush2.msra.mxu0 0.0
    %754 = vmatprep.subr.mxu0 0.0
    %755 = vmatpush2.msra.mxu0 0.0
    %756 = vmatprep.subr.mxu0 0.0
    %757 = vmatpush2.msra.mxu0 0.0
    %758 = vmatprep.subr.mxu0 0.0
    %759 = vmatpush2.msra.mxu0 0.0
    %760 = vmatprep.subr.mxu0 0.0
    %761 = vmatpush2.msra.mxu0 0.0
    %762 = vmatprep.subr.mxu0 0.0
    %763 = vmatpush2.msra.mxu0 0.0
    %764 = vmatprep.subr.mxu0 0.0
    %765 = vmatpush2.msra.mxu0 0.0
    %766 = vmatprep.subr.mxu0 0.0
    %767 = vmatpush2.msra.mxu0 0.0
    %768 = vmatprep.mubr.f32.mxu0 0.0
    %769 = vmatmul.mubr.f32.gmra.mxu0 %v702
    %v770 = vpop.f32.mrf.mxu0
    %v771 = vadd.f32 0.0, %v770
    %v772 = vpop.f32.mrf.mxu0
    %773 = vdwg.mxu0
    %v774 = vadd.f32 %v219, %v771
    %v775 = vxor.u32 %v774, 2147483648
    %v776 = vmul.f32 %v775, 1.442695
    %v777 = vpow.pop %v776
    %v778 = vadd.f32 %v777, 1.0
    %v779 = vrcp.pop %v778
    %v780 = vmul.f32 1.0, %v779
    %v781 = vtanh.pop %v774
    %783 = vrot.lane.b32.xlu0 %v694, 16
    %v784 = vpop.permute.xlu0 %783
    %v786 = vmul.f32 %v780, %v784
    %788 = vrot.lane.b32.xlu0 %v781, 80
    %v789 = vpop.permute.xlu0 %788
    %v791 = vmul.f32 %v780, %v789
    %793 = vrot.lane.b32.xlu0 %v791, 16
    %v794 = vpop.permute.xlu0 %793
    %v796 = vadd.f32 %v786, %v794
    %v797 = vtanh.pop %v796
    %799 = vrot.lane.b32.xlu0 %v797, 16
    %v800 = vpop.permute.xlu0 %799
    %v802 = vmul.f32 %v780, %v800
    %803 = vset.pattern.permute.xlu0 4
    %804 = vperm.xlu0 %803, %v324
    %v805 = vpop.permute.xlu0 %804
    %vm806 = vcmp.eq.s32.totalorder %v805, 1
    %v807 = vsel %vm806, %v796, %v784
    %808 = vrot.lane.b32.xlu0 %v700, 32
    %v809 = vpop.permute.xlu0 %808
    %v811 = vsel %vm806, %v802, %v809
    %813 = vrot.lane.b32.xlu0 %v811, 96
    %v814 = vpop.permute.xlu0 %813
    %v815 = vsel %vm140, %v814, 0
    %817 = vmatprep.subr.mxu0 0.0
    %818 = vmatpush1.msra.mxu0 0.0
    %819 = vmatprep.subr.mxu0 0.0
    %820 = vmatpush1.msra.mxu0 0.0
    %821 = vmatprep.subr.mxu0 0.0
    %822 = vmatpush1.msra.mxu0 0.0
    %823 = vmatprep.subr.mxu0 0.0
    %824 = vmatpush1.msra.mxu0 0.0
    %825 = vmatprep.subr.mxu0 0.0
    %826 = vmatpush1.msra.mxu0 0.0
    %827 = vmatprep.subr.mxu0 0.0
    %828 = vmatpush1.msra.mxu0 0.0
    %829 = vmatprep.subr.mxu0 0.0
    %830 = vmatpush1.msra.mxu0 0.0
    %831 = vmatprep.subr.mxu0 0.0
    %832 = vmatpush1.msra.mxu0 0.0
    %833 = vmatprep.subr.mxu0 0.0
    %834 = vmatpush1.msra.mxu0 0.0
    %835 = vmatprep.subr.mxu0 0.0
    %836 = vmatpush1.msra.mxu0 0.0
    %837 = vmatprep.subr.mxu0 0.0
    %838 = vmatpush1.msra.mxu0 0.0
    %839 = vmatprep.subr.mxu0 0.0
    %840 = vmatpush1.msra.mxu0 0.0
    %841 = vmatprep.subr.mxu0 0.0
    %842 = vmatpush1.msra.mxu0 0.0
    %843 = vmatprep.subr.mxu0 0.0
    %844 = vmatpush1.msra.mxu0 0.0
    %845 = vmatprep.subr.mxu0 0.0
    %846 = vmatpush1.msra.mxu0 %v223
    %847 = vmatprep.subr.mxu0 0.0
    %848 = vmatpush1.msra.mxu0 %v222
    %849 = vmatprep.subr.mxu0 0.0
    %850 = vmatpush2.msra.mxu0 0.0
    %851 = vmatprep.subr.mxu0 0.0
    %852 = vmatpush2.msra.mxu0 0.0
    %853 = vmatprep.subr.mxu0 0.0
    %854 = vmatpush2.msra.mxu0 0.0
    %855 = vmatprep.subr.mxu0 0.0
    %856 = vmatpush2.msra.mxu0 0.0
    %857 = vmatprep.subr.mxu0 0.0
    %858 = vmatpush2.msra.mxu0 0.0
    %859 = vmatprep.subr.mxu0 0.0
    %860 = vmatpush2.msra.mxu0 0.0
    %861 = vmatprep.subr.mxu0 0.0
    %862 = vmatpush2.msra.mxu0 0.0
    %863 = vmatprep.subr.mxu0 0.0
    %864 = vmatpush2.msra.mxu0 0.0
    %865 = vmatprep.subr.mxu0 0.0
    %866 = vmatpush2.msra.mxu0 0.0
    %867 = vmatprep.subr.mxu0 0.0
    %868 = vmatpush2.msra.mxu0 0.0
    %869 = vmatprep.subr.mxu0 0.0
    %870 = vmatpush2.msra.mxu0 0.0
    %871 = vmatprep.subr.mxu0 0.0
    %872 = vmatpush2.msra.mxu0 0.0
    %873 = vmatprep.subr.mxu0 0.0
    %874 = vmatpush2.msra.mxu0 0.0
    %875 = vmatprep.subr.mxu0 0.0
    %876 = vmatpush2.msra.mxu0 0.0
    %877 = vmatprep.subr.mxu0 0.0
    %878 = vmatpush2.msra.mxu0 0.0
    %879 = vmatprep.subr.mxu0 0.0
    %880 = vmatpush2.msra.mxu0 0.0
    %881 = vmatprep.mubr.f32.mxu0 0.0
    %882 = vmatmul.mubr.f32.gmra.mxu0 %v815
    %v883 = vpop.f32.mrf.mxu0
    %v884 = vadd.f32 0.0, %v883
    %v885 = vpop.f32.mrf.mxu0
    %886 = vdwg.mxu0
    %v888 = vrot.slane %v884, 6
    %v890 = vadd.f32 %v219, %v888
    %v891 = vxor.u32 %v890, 2147483648
    %v892 = vmul.f32 %v891, 1.442695
    %v893 = vpow.pop %v892
    %v894 = vadd.f32 %v893, 1.0
    %v895 = vrcp.pop %v894
    %v896 = vmul.f32 1.0, %v895
    %v897 = vtanh.pop %v890
    %v899 = vrot.slane %v807, 6
    %v901 = vmul.f32 %v896, %v899
    %903 = vrot.lane.b32.xlu0 %v897, 80
    %v904 = vpop.permute.xlu0 %903
    %v906 = vmul.f32 %v896, %v904
    %908 = vrot.lane.b32.xlu0 %v906, 16
    %v909 = vpop.permute.xlu0 %908
    %v911 = vadd.f32 %v901, %v909
    %v912 = vtanh.pop %v911
    %914 = vrot.lane.b32.xlu0 %v912, 16
    %v915 = vpop.permute.xlu0 %914
    %v917 = vmul.f32 %v896, %v915
    %918 = vset.pattern.permute.xlu0 5
    %919 = vperm.xlu0 %918, %v324
    %v920 = vpop.permute.xlu0 %919
    %vm921 = vcmp.eq.s32.totalorder %v920, 1
    %v923 = vrot.slane %v911, 2
    %924 = vrot.lane.b32.xlu0 %v923, 112
    %v925 = vpop.permute.xlu0 %924
    %927 = vrot.lane.b32.xlu0 %v807, 112
    %v928 = vpop.permute.xlu0 %927
    %v930 = vsel %vm921, %v925, %v928
    %v932 = vrot.slane %v917, 2
    %933 = vrot.lane.b32.xlu0 %v932, 96
    %v934 = vpop.permute.xlu0 %933
    %v937 = vsel %vm921, %v934, %v814
    %v939 = vsel %vm140, %v937, 0
    %941 = vmatprep.subr.mxu0 0.0
    %942 = vmatpush1.msra.mxu0 0.0
    %943 = vmatprep.subr.mxu0 0.0
    %944 = vmatpush1.msra.mxu0 0.0
    %945 = vmatprep.subr.mxu0 0.0
    %946 = vmatpush1.msra.mxu0 0.0
    %947 = vmatprep.subr.mxu0 0.0
    %948 = vmatpush1.msra.mxu0 0.0
    %949 = vmatprep.subr.mxu0 0.0
    %950 = vmatpush1.msra.mxu0 0.0
    %951 = vmatprep.subr.mxu0 0.0
    %952 = vmatpush1.msra.mxu0 0.0
    %953 = vmatprep.subr.mxu0 0.0
    %954 = vmatpush1.msra.mxu0 0.0
    %955 = vmatprep.subr.mxu0 0.0
    %956 = vmatpush1.msra.mxu0 0.0
    %957 = vmatprep.subr.mxu0 0.0
    %958 = vmatpush1.msra.mxu0 0.0
    %959 = vmatprep.subr.mxu0 0.0
    %960 = vmatpush1.msra.mxu0 0.0
    %961 = vmatprep.subr.mxu0 0.0
    %962 = vmatpush1.msra.mxu0 0.0
    %963 = vmatprep.subr.mxu0 0.0
    %964 = vmatpush1.msra.mxu0 0.0
    %965 = vmatprep.subr.mxu0 0.0
    %966 = vmatpush1.msra.mxu0 0.0
    %967 = vmatprep.subr.mxu0 0.0
    %968 = vmatpush1.msra.mxu0 0.0
    %969 = vmatprep.subr.mxu0 0.0
    %970 = vmatpush1.msra.mxu0 %v223
    %971 = vmatprep.subr.mxu0 0.0
    %972 = vmatpush1.msra.mxu0 %v222
    %973 = vmatprep.subr.mxu0 0.0
    %974 = vmatpush2.msra.mxu0 0.0
    %975 = vmatprep.subr.mxu0 0.0
    %976 = vmatpush2.msra.mxu0 0.0
    %977 = vmatprep.subr.mxu0 0.0
    %978 = vmatpush2.msra.mxu0 0.0
    %979 = vmatprep.subr.mxu0 0.0
    %980 = vmatpush2.msra.mxu0 0.0
    %981 = vmatprep.subr.mxu0 0.0
    %982 = vmatpush2.msra.mxu0 0.0
    %983 = vmatprep.subr.mxu0 0.0
    %984 = vmatpush2.msra.mxu0 0.0
    %985 = vmatprep.subr.mxu0 0.0
    %986 = vmatpush2.msra.mxu0 0.0
    %987 = vmatprep.subr.mxu0 0.0
    %988 = vmatpush2.msra.mxu0 0.0
    %989 = vmatprep.subr.mxu0 0.0
    %990 = vmatpush2.msra.mxu0 0.0
    %991 = vmatprep.subr.mxu0 0.0
    %992 = vmatpush2.msra.mxu0 0.0
    %993 = vmatprep.subr.mxu0 0.0
    %994 = vmatpush2.msra.mxu0 0.0
    %995 = vmatprep.subr.mxu0 0.0
    %996 = vmatpush2.msra.mxu0 0.0
    %997 = vmatprep.subr.mxu0 0.0
    %998 = vmatpush2.msra.mxu0 0.0
    %999 = vmatprep.subr.mxu0 0.0
    %1000 = vmatpush2.msra.mxu0 0.0
    %1001 = vmatprep.subr.mxu0 0.0
    %1002 = vmatpush2.msra.mxu0 0.0
    %1003 = vmatprep.subr.mxu0 0.0
    %1004 = vmatpush2.msra.mxu0 0.0
    %1005 = vmatprep.mubr.f32.mxu0 0.0
    %1006 = vmatmul.mubr.f32.gmra.mxu0 %v939
    %v1007 = vpop.f32.mrf.mxu0
    %v1008 = vadd.f32 0.0, %v1007
    %v1009 = vpop.f32.mrf.mxu0
    %1010 = vdwg.mxu0
    %v1012 = vrot.slane %v1008, 4
    %v1014 = vadd.f32 %v219, %v1012
    %v1015 = vxor.u32 %v1014, 2147483648
    %v1016 = vmul.f32 %v1015, 1.442695
    %v1017 = vpow.pop %v1016
    %v1018 = vadd.f32 %v1017, 1.0
    %v1019 = vrcp.pop %v1018
    %v1020 = vmul.f32 1.0, %v1019
    %v1021 = vtanh.pop %v1014
    %v1023 = vrot.slane %v930, 4
    %1024 = vrot.lane.b32.xlu0 %v1023, 16
    %v1025 = vpop.permute.xlu0 %1024
    %v1027 = vmul.f32 %v1020, %v1025
    %1029 = vrot.lane.b32.xlu0 %v1021, 80
    %v1030 = vpop.permute.xlu0 %1029
    %v1032 = vmul.f32 %v1020, %v1030
    %1034 = vrot.lane.b32.xlu0 %v1032, 16
    %v1035 = vpop.permute.xlu0 %1034
    %v1037 = vadd.f32 %v1027, %v1035
    %v1038 = vtanh.pop %v1037
    %1040 = vrot.lane.b32.xlu0 %v1038, 16
    %v1041 = vpop.permute.xlu0 %1040
    %v1043 = vmul.f32 %v1020, %v1041
    %1044 = vset.pattern.permute.xlu0 6
    %1045 = vperm.xlu0 %1044, %v324
    %v1046 = vpop.permute.xlu0 %1045
    %vm1047 = vcmp.eq.s32.totalorder %v1046, 1
    %v1049 = vrot.slane %v1037, 4
    %1050 = vrot.lane.b32.xlu0 %v1049, 112
    %v1051 = vpop.permute.xlu0 %1050
    %v1053 = vsel %vm1047, %v1051, %v930
    %v1055 = vrot.slane %v1043, 4
    %1056 = vrot.lane.b32.xlu0 %v1055, 96
    %v1057 = vpop.permute.xlu0 %1056
    %v1059 = vsel %vm1047, %v1057, %v937
    %v1061 = vsel %vm140, %v1059, 0
    %1063 = vmatprep.subr.mxu0 0.0
    %1064 = vmatpush1.msra.mxu0 0.0
    %1065 = vmatprep.subr.mxu0 0.0
    %1066 = vmatpush1.msra.mxu0 0.0
    %1067 = vmatprep.subr.mxu0 0.0
    %1068 = vmatpush1.msra.mxu0 0.0
    %1069 = vmatprep.subr.mxu0 0.0
    %1070 = vmatpush1.msra.mxu0 0.0
    %1071 = vmatprep.subr.mxu0 0.0
    %1072 = vmatpush1.msra.mxu0 0.0
    %1073 = vmatprep.subr.mxu0 0.0
    %1074 = vmatpush1.msra.mxu0 0.0
    %1075 = vmatprep.subr.mxu0 0.0
    %1076 = vmatpush1.msra.mxu0 0.0
    %1077 = vmatprep.subr.mxu0 0.0
    %1078 = vmatpush1.msra.mxu0 0.0
    %1079 = vmatprep.subr.mxu0 0.0
    %1080 = vmatpush1.msra.mxu0 0.0
    %1081 = vmatprep.subr.mxu0 0.0
    %1082 = vmatpush1.msra.mxu0 0.0
    %1083 = vmatprep.subr.mxu0 0.0
    %1084 = vmatpush1.msra.mxu0 0.0
    %1085 = vmatprep.subr.mxu0 0.0
    %1086 = vmatpush1.msra.mxu0 0.0
    %1087 = vmatprep.subr.mxu0 0.0
    %1088 = vmatpush1.msra.mxu0 0.0
    %1089 = vmatprep.subr.mxu0 0.0
    %1090 = vmatpush1.msra.mxu0 0.0
    %1091 = vmatprep.subr.mxu0 0.0
    %1092 = vmatpush1.msra.mxu0 %v223
    %1093 = vmatprep.subr.mxu0 0.0
    %1094 = vmatpush1.msra.mxu0 %v222
    %1095 = vmatprep.subr.mxu0 0.0
    %1096 = vmatpush2.msra.mxu0 0.0
    %1097 = vmatprep.subr.mxu0 0.0
    %1098 = vmatpush2.msra.mxu0 0.0
    %1099 = vmatprep.subr.mxu0 0.0
    %1100 = vmatpush2.msra.mxu0 0.0
    %1101 = vmatprep.subr.mxu0 0.0
    %1102 = vmatpush2.msra.mxu0 0.0
    %1103 = vmatprep.subr.mxu0 0.0
    %1104 = vmatpush2.msra.mxu0 0.0
    %1105 = vmatprep.subr.mxu0 0.0
    %1106 = vmatpush2.msra.mxu0 0.0
    %1107 = vmatprep.subr.mxu0 0.0
    %1108 = vmatpush2.msra.mxu0 0.0
    %1109 = vmatprep.subr.mxu0 0.0
    %1110 = vmatpush2.msra.mxu0 0.0
    %1111 = vmatprep.subr.mxu0 0.0
    %1112 = vmatpush2.msra.mxu0 0.0
    %1113 = vmatprep.subr.mxu0 0.0
    %1114 = vmatpush2.msra.mxu0 0.0
    %1115 = vmatprep.subr.mxu0 0.0
    %1116 = vmatpush2.msra.mxu0 0.0
    %1117 = vmatprep.subr.mxu0 0.0
    %1118 = vmatpush2.msra.mxu0 0.0
    %1119 = vmatprep.subr.mxu0 0.0
    %1120 = vmatpush2.msra.mxu0 0.0
    %1121 = vmatprep.subr.mxu0 0.0
    %1122 = vmatpush2.msra.mxu0 0.0
    %1123 = vmatprep.subr.mxu0 0.0
    %1124 = vmatpush2.msra.mxu0 0.0
    %1125 = vmatprep.subr.mxu0 0.0
    %1126 = vmatpush2.msra.mxu0 0.0
    %1127 = vmatprep.mubr.f32.mxu0 0.0
    %1128 = vmatmul.mubr.f32.gmra.mxu0 %v1061
    %v1129 = vpop.f32.mrf.mxu0
    %v1130 = vadd.f32 0.0, %v1129
    %v1131 = vpop.f32.mrf.mxu0
    %1132 = vdwg.mxu0
    %v1134 = vrot.slane %v1130, 2
    %v1136 = vadd.f32 %v219, %v1134
    %v1137 = vxor.u32 %v1136, 2147483648
    %v1138 = vmul.f32 %v1137, 1.442695
    %v1139 = vpow.pop %v1138
    %v1140 = vadd.f32 %v1139, 1.0
    %v1141 = vrcp.pop %v1140
    %v1142 = vmul.f32 1.0, %v1141
    %v1143 = vtanh.pop %v1136
    %v1145 = vrot.slane %v1053, 2
    %1146 = vrot.lane.b32.xlu0 %v1145, 16
    %v1147 = vpop.permute.xlu0 %1146
    %v1149 = vmul.f32 %v1142, %v1147
    %1151 = vrot.lane.b32.xlu0 %v1143, 80
    %v1152 = vpop.permute.xlu0 %1151
    %v1154 = vmul.f32 %v1142, %v1152
    %1156 = vrot.lane.b32.xlu0 %v1154, 16
    %v1157 = vpop.permute.xlu0 %1156
    %v1159 = vadd.f32 %v1149, %v1157
    %1160 = vset.pattern.permute.xlu0 7
    %1161 = vperm.xlu0 %1160, %v324
    %v1162 = vpop.permute.xlu0 %1161
    %vm1163 = vcmp.eq.s32.totalorder %v1162, 1
    %v1165 = vrot.slane %v1159, 6
    %1166 = vrot.lane.b32.xlu0 %v1165, 112
    %v1167 = vpop.permute.xlu0 %1166
    %v1169 = vsel %vm1163, %v1167, %v1053
    %v1170 = vld [vmem:[%s2] sm:$0xff]
    %v1171 = vld [vmem:[%s2 + $0x8] sm:$0xff]
    %v1172 = vld [vmem:[%s2 + $0x10] sm:$0xff]
    %v1173 = vld [vmem:[%s2 + $0x18] sm:$0xff]
    %v1174 = vld [vmem:[#allocation5] sm:$0x3]
    %v1175 = vld [vmem:[#allocation8] sm:$0xff]
    %v1176 = vld [vmem:[#allocation10] sm:$0xff]
    %v1178 = vsel %vm140, %v1176, 0
    %v1181 = vsel %vm140, %v1169, 0
    %1183 = vmatprep.subr.mxu0 0.0
    %1184 = vmatpush1.xpose.msra.mxu0 0.0
    %1185 = vmatprep.subr.mxu0 0.0
    %1186 = vmatpush1.xpose.msra.mxu0 0.0
    %1187 = vmatprep.subr.mxu0 0.0
    %1188 = vmatpush1.xpose.msra.mxu0 0.0
    %1189 = vmatprep.subr.mxu0 0.0
    %1190 = vmatpush1.xpose.msra.mxu0 0.0
    %1191 = vmatprep.subr.mxu0 0.0
    %1192 = vmatpush1.xpose.msra.mxu0 0.0
    %1193 = vmatprep.subr.mxu0 0.0
    %1194 = vmatpush1.xpose.msra.mxu0 0.0
    %1195 = vmatprep.subr.mxu0 0.0
    %1196 = vmatpush1.xpose.msra.mxu0 0.0
    %1197 = vmatprep.subr.mxu0 0.0
    %1198 = vmatpush1.xpose.msra.mxu0 0.0
    %1199 = vmatprep.subr.mxu0 0.0
    %1200 = vmatpush1.xpose.msra.mxu0 0.0
    %1201 = vmatprep.subr.mxu0 0.0
    %1202 = vmatpush1.xpose.msra.mxu0 0.0
    %1203 = vmatprep.subr.mxu0 0.0
    %1204 = vmatpush1.xpose.msra.mxu0 0.0
    %1205 = vmatprep.subr.mxu0 0.0
    %1206 = vmatpush1.xpose.msra.mxu0 0.0
    %1207 = vmatprep.subr.mxu0 0.0
    %1208 = vmatpush1.xpose.msra.mxu0 0.0
    %1209 = vmatprep.subr.mxu0 0.0
    %1210 = vmatpush1.xpose.msra.mxu0 0.0
    %1211 = vmatprep.subr.mxu0 0.0
    %1212 = vmatpush1.xpose.msra.mxu0 0.0
    %1213 = vmatprep.subr.mxu0 0.0
    %1214 = vmatpush1.xpose.msra.mxu0 %v1181
    %1215 = vmatprep.subr.mxu0 0.0
    %1216 = vmatpush2.xpose.msra.mxu0 0.0
    %1217 = vmatprep.subr.mxu0 0.0
    %1218 = vmatpush2.xpose.msra.mxu0 0.0
    %1219 = vmatprep.subr.mxu0 0.0
    %1220 = vmatpush2.xpose.msra.mxu0 0.0
    %1221 = vmatprep.subr.mxu0 0.0
    %1222 = vmatpush2.xpose.msra.mxu0 0.0
    %1223 = vmatprep.subr.mxu0 0.0
    %1224 = vmatpush2.xpose.msra.mxu0 0.0
    %1225 = vmatprep.subr.mxu0 0.0
    %1226 = vmatpush2.xpose.msra.mxu0 0.0
    %1227 = vmatprep.subr.mxu0 0.0
    %1228 = vmatpush2.xpose.msra.mxu0 0.0
    %1229 = vmatprep.subr.mxu0 0.0
    %1230 = vmatpush2.xpose.msra.mxu0 0.0
    %1231 = vmatprep.subr.mxu0 0.0
    %1232 = vmatpush2.xpose.msra.mxu0 0.0
    %1233 = vmatprep.subr.mxu0 0.0
    %1234 = vmatpush2.xpose.msra.mxu0 0.0
    %1235 = vmatprep.subr.mxu0 0.0
    %1236 = vmatpush2.xpose.msra.mxu0 0.0
    %1237 = vmatprep.subr.mxu0 0.0
    %1238 = vmatpush2.xpose.msra.mxu0 0.0
    %1239 = vmatprep.subr.mxu0 0.0
    %1240 = vmatpush2.xpose.msra.mxu0 0.0
    %1241 = vmatprep.subr.mxu0 0.0
    %1242 = vmatpush2.xpose.msra.mxu0 0.0
    %1243 = vmatprep.subr.mxu0 0.0
    %1244 = vmatpush2.xpose.msra.mxu0 0.0
    %1245 = vmatprep.subr.mxu0 0.0
    %1246 = vmatpush2.xpose.msra.mxu0 0.0
    %1247 = vmatprep.mubr.f32.mxu0 0.0
    %1248 = vmatmul.mubr.f32.gmra.mxu0 %v1178
    %v1249 = vpop.f32.mrf.mxu0
    %v1250 = vadd.f32 0.0, %v1249
    %v1251 = vpop.f32.mrf.mxu0
    %1252 = vdwg.mxu0
    %vm1253 = vcmask 15360
    %v1255 = vsel %vm1253, %v1250, 0
    %vm1257 = vcmask 1041408
    %v1259 = vsel %vm1257, %v1174, 0
    %1261 = vmatprep.subr.mxu0 0.0
    %1262 = vmatpush1.msra.mxu0 0.0
    %1263 = vmatprep.subr.mxu0 0.0
    %1264 = vmatpush1.msra.mxu0 0.0
    %1265 = vmatprep.subr.mxu0 0.0
    %1266 = vmatpush1.msra.mxu0 0.0
    %1267 = vmatprep.subr.mxu0 0.0
    %1268 = vmatpush1.msra.mxu0 0.0
    %1269 = vmatprep.subr.mxu0 0.0
    %1270 = vmatpush1.msra.mxu0 0.0
    %1271 = vmatprep.subr.mxu0 0.0
    %1272 = vmatpush1.msra.mxu0 0.0
    %1273 = vmatprep.subr.mxu0 0.0
    %1274 = vmatpush1.msra.mxu0 0.0
    %1275 = vmatprep.subr.mxu0 0.0
    %1276 = vmatpush1.msra.mxu0 0.0
    %1277 = vmatprep.subr.mxu0 0.0
    %1278 = vmatpush1.msra.mxu0 0.0
    %1279 = vmatprep.subr.mxu0 0.0
    %1280 = vmatpush1.msra.mxu0 0.0
    %1281 = vmatprep.subr.mxu0 0.0
    %1282 = vmatpush1.msra.mxu0 0.0
    %1283 = vmatprep.subr.mxu0 0.0
    %1284 = vmatpush1.msra.mxu0 0.0
    %1285 = vmatprep.subr.mxu0 0.0
    %1286 = vmatpush1.msra.mxu0 0.0
    %1287 = vmatprep.subr.mxu0 0.0
    %1288 = vmatpush1.msra.mxu0 0.0
    %1289 = vmatprep.subr.mxu0 0.0
    %1290 = vmatpush1.msra.mxu0 0.0
    %1291 = vmatprep.subr.mxu0 0.0
    %1292 = vmatpush1.msra.mxu0 %v1259
    %1293 = vmatprep.subr.mxu0 0.0
    %1294 = vmatpush2.msra.mxu0 0.0
    %1295 = vmatprep.subr.mxu0 0.0
    %1296 = vmatpush2.msra.mxu0 0.0
    %1297 = vmatprep.subr.mxu0 0.0
    %1298 = vmatpush2.msra.mxu0 0.0
    %1299 = vmatprep.subr.mxu0 0.0
    %1300 = vmatpush2.msra.mxu0 0.0
    %1301 = vmatprep.subr.mxu0 0.0
    %1302 = vmatpush2.msra.mxu0 0.0
    %1303 = vmatprep.subr.mxu0 0.0
    %1304 = vmatpush2.msra.mxu0 0.0
    %1305 = vmatprep.subr.mxu0 0.0
    %1306 = vmatpush2.msra.mxu0 0.0
    %1307 = vmatprep.subr.mxu0 0.0
    %1308 = vmatpush2.msra.mxu0 0.0
    %1309 = vmatprep.subr.mxu0 0.0
    %1310 = vmatpush2.msra.mxu0 0.0
    %1311 = vmatprep.subr.mxu0 0.0
    %1312 = vmatpush2.msra.mxu0 0.0
    %1313 = vmatprep.subr.mxu0 0.0
    %1314 = vmatpush2.msra.mxu0 0.0
    %1315 = vmatprep.subr.mxu0 0.0
    %1316 = vmatpush2.msra.mxu0 0.0
    %1317 = vmatprep.subr.mxu0 0.0
    %1318 = vmatpush2.msra.mxu0 0.0
    %1319 = vmatprep.subr.mxu0 0.0
    %1320 = vmatpush2.msra.mxu0 0.0
    %1321 = vmatprep.subr.mxu0 0.0
    %1322 = vmatpush2.msra.mxu0 0.0
    %1323 = vmatprep.subr.mxu0 0.0
    %1324 = vmatpush2.msra.mxu0 0.0
    %1325 = vmatprep.mubr.f32.mxu0 0.0
    %1326 = vmatmul.mubr.f32.gmra.mxu0 %v1255
    %v1327 = vpop.f32.mrf.mxu0
    %v1328 = vadd.f32 0.0, %v1327
    %v1329 = vpop.f32.mrf.mxu0
    %1330 = vdwg.mxu0
    %vm1331 = vcmask 261120
    %v1333 = vsel %vm1331, %v1175, 0
    %1335 = vmatprep.subr.mxu0 0.0
    %1336 = vmatpush1.msra.mxu0 0.0
    %1337 = vmatprep.subr.mxu0 0.0
    %1338 = vmatpush1.msra.mxu0 0.0
    %1339 = vmatprep.subr.mxu0 0.0
    %1340 = vmatpush1.msra.mxu0 0.0
    %1341 = vmatprep.subr.mxu0 0.0
    %1342 = vmatpush1.msra.mxu0 0.0
    %1343 = vmatprep.subr.mxu0 0.0
    %1344 = vmatpush1.msra.mxu0 0.0
    %1345 = vmatprep.subr.mxu0 0.0
    %1346 = vmatpush1.msra.mxu0 0.0
    %1347 = vmatprep.subr.mxu0 0.0
    %1348 = vmatpush1.msra.mxu0 0.0
    %1349 = vmatprep.subr.mxu0 0.0
    %1350 = vmatpush1.msra.mxu0 0.0
    %1351 = vmatprep.subr.mxu0 0.0
    %1352 = vmatpush1.msra.mxu0 0.0
    %1353 = vmatprep.subr.mxu0 0.0
    %1354 = vmatpush1.msra.mxu0 0.0
    %1355 = vmatprep.subr.mxu0 0.0
    %1356 = vmatpush1.msra.mxu0 0.0
    %1357 = vmatprep.subr.mxu0 0.0
    %1358 = vmatpush1.msra.mxu0 0.0
    %1359 = vmatprep.subr.mxu0 0.0
    %1360 = vmatpush1.msra.mxu0 %v1173
    %1361 = vmatprep.subr.mxu0 0.0
    %1362 = vmatpush1.msra.mxu0 %v1172
    %1363 = vmatprep.subr.mxu0 0.0
    %1364 = vmatpush1.msra.mxu0 %v1171
    %1365 = vmatprep.subr.mxu0 0.0
    %1366 = vmatpush1.msra.mxu0 %v1170
    %1367 = vmatprep.subr.mxu0 0.0
    %1368 = vmatpush2.msra.mxu0 0.0
    %1369 = vmatprep.subr.mxu0 0.0
    %1370 = vmatpush2.msra.mxu0 0.0
    %1371 = vmatprep.subr.mxu0 0.0
    %1372 = vmatpush2.msra.mxu0 0.0
    %1373 = vmatprep.subr.mxu0 0.0
    %1374 = vmatpush2.msra.mxu0 0.0
    %1375 = vmatprep.subr.mxu0 0.0
    %1376 = vmatpush2.msra.mxu0 0.0
    %1377 = vmatprep.subr.mxu0 0.0
    %1378 = vmatpush2.msra.mxu0 0.0
    %1379 = vmatprep.subr.mxu0 0.0
    %1380 = vmatpush2.msra.mxu0 0.0
    %1381 = vmatprep.subr.mxu0 0.0
    %1382 = vmatpush2.msra.mxu0 0.0
    %1383 = vmatprep.subr.mxu0 0.0
    %1384 = vmatpush2.msra.mxu0 0.0
    %1385 = vmatprep.subr.mxu0 0.0
    %1386 = vmatpush2.msra.mxu0 0.0
    %1387 = vmatprep.subr.mxu0 0.0
    %1388 = vmatpush2.msra.mxu0 0.0
    %1389 = vmatprep.subr.mxu0 0.0
    %1390 = vmatpush2.msra.mxu0 0.0
    %1391 = vmatprep.subr.mxu0 0.0
    %1392 = vmatpush2.msra.mxu0 0.0
    %1393 = vmatprep.subr.mxu0 0.0
    %1394 = vmatpush2.msra.mxu0 0.0
    %1395 = vmatprep.subr.mxu0 0.0
    %1396 = vmatpush2.msra.mxu0 0.0
    %1397 = vmatprep.subr.mxu0 0.0
    %1398 = vmatpush2.msra.mxu0 0.0
    %1399 = vmatprep.mubr.f32.mxu0 0.0
    %1400 = vmatmul.mubr.f32.gmra.mxu0 %v1333
    %v1401 = vpop.f32.mrf.mxu0
    %v1402 = vadd.f32 %v1328, %v1401
    %v1403 = vpop.f32.mrf.mxu0
    %1404 = vdwg.mxu0
    %v1405 = vld [vmem:[%s8] sm:$0xff]
    %1407 = vset.pattern.permute.xlu0 0
    %1408 = vperm.xlu0 %1407, %v1405
    %v1409 = vpop.permute.xlu0 %1408
    %v1411 = vadd.f32 %v1402, %v1409
    %v1412 = vmax.f32 %v1411, 0.0
    %v1413 = vld [vmem:[#allocation11] sm:$0x3]
    %v1414 = vld [vmem:[%s11] sm:$0x3]
    %1416 = vset.pattern.permute.xlu0 0
    %1417 = vperm.xlu0 %1416, %v1414
    %v1418 = vpop.permute.xlu0 %1417
    %vm1420 = vcmask 64512
    %v1422 = vsel %vm1420, %v1413, 0
    %1424 = vmatprep.subr.mxu0 0.0
    %1425 = vmatpush1.msra.mxu0 0.0
    %1426 = vmatprep.subr.mxu0 0.0
    %1427 = vmatpush1.msra.mxu0 0.0
    %1428 = vmatprep.subr.mxu0 0.0
    %1429 = vmatpush1.msra.mxu0 0.0
    %1430 = vmatprep.subr.mxu0 0.0
    %1431 = vmatpush1.msra.mxu0 0.0
    %1432 = vmatprep.subr.mxu0 0.0
    %1433 = vmatpush1.msra.mxu0 0.0
    %1434 = vmatprep.subr.mxu0 0.0
    %1435 = vmatpush1.msra.mxu0 0.0
    %1436 = vmatprep.subr.mxu0 0.0
    %1437 = vmatpush1.msra.mxu0 0.0
    %1438 = vmatprep.subr.mxu0 0.0
    %1439 = vmatpush1.msra.mxu0 0.0
    %1440 = vmatprep.subr.mxu0 0.0
    %1441 = vmatpush1.msra.mxu0 0.0
    %1442 = vmatprep.subr.mxu0 0.0
    %1443 = vmatpush1.msra.mxu0 0.0
    %1444 = vmatprep.subr.mxu0 0.0
    %1445 = vmatpush1.msra.mxu0 0.0
    %1446 = vmatprep.subr.mxu0 0.0
    %1447 = vmatpush1.msra.mxu0 0.0
    %1448 = vmatprep.subr.mxu0 0.0
    %1449 = vmatpush1.msra.mxu0 0.0
    %1450 = vmatprep.subr.mxu0 0.0
    %1451 = vmatpush1.msra.mxu0 0.0
    %1452 = vmatprep.subr.mxu0 0.0
    %1453 = vmatpush1.msra.mxu0 0.0
    %1454 = vmatprep.subr.mxu0 0.0
    %1455 = vmatpush1.msra.mxu0 %v1412
    %1456 = vmatprep.subr.mxu0 0.0
    %1457 = vmatpush2.msra.mxu0 0.0
    %1458 = vmatprep.subr.mxu0 0.0
    %1459 = vmatpush2.msra.mxu0 0.0
    %1460 = vmatprep.subr.mxu0 0.0
    %1461 = vmatpush2.msra.mxu0 0.0
    %1462 = vmatprep.subr.mxu0 0.0
    %1463 = vmatpush2.msra.mxu0 0.0
    %1464 = vmatprep.subr.mxu0 0.0
    %1465 = vmatpush2.msra.mxu0 0.0
    %1466 = vmatprep.subr.mxu0 0.0
    %1467 = vmatpush2.msra.mxu0 0.0
    %1468 = vmatprep.subr.mxu0 0.0
    %1469 = vmatpush2.msra.mxu0 0.0
    %1470 = vmatprep.subr.mxu0 0.0
    %1471 = vmatpush2.msra.mxu0 0.0
    %1472 = vmatprep.subr.mxu0 0.0
    %1473 = vmatpush2.msra.mxu0 0.0
    %1474 = vmatprep.subr.mxu0 0.0
    %1475 = vmatpush2.msra.mxu0 0.0
    %1476 = vmatprep.subr.mxu0 0.0
    %1477 = vmatpush2.msra.mxu0 0.0
    %1478 = vmatprep.subr.mxu0 0.0
    %1479 = vmatpush2.msra.mxu0 0.0
    %1480 = vmatprep.subr.mxu0 0.0
    %1481 = vmatpush2.msra.mxu0 0.0
    %1482 = vmatprep.subr.mxu0 0.0
    %1483 = vmatpush2.msra.mxu0 0.0
    %1484 = vmatprep.subr.mxu0 0.0
    %1485 = vmatpush2.msra.mxu0 0.0
    %1486 = vmatprep.subr.mxu0 0.0
    %1487 = vmatpush2.msra.mxu0 0.0
    %1488 = vmatprep.mubr.f32.mxu0 0.0
    %1489 = vmatmul.mubr.f32.gmra.mxu0 %v1422
    %v1490 = vpop.f32.mrf.mxu0
    %v1491 = vadd.f32 %v1418, %v1490
    %v1492 = vpop.f32.mrf.mxu0
    %1493 = vdwg.mxu0
    %vm1494 = vcmask 123904
    %v1495 = vsel %vm1494, %v1491, -inf
    %1496 = vmax.xlane.f32.xlu0 %v1495
    %v1497 = vpop.xlane.xlu0 %1496
    %v1498 = vlaneseq
    %v1499 = vshrl.u32 %v1498, 7
    %v1500 = vsub.s32 0, %v1499
    %v1501 = vrot.slane %v1174, %v1500
    %v1502 = vmul.f32 %v1497, %v1501
    %v1503 = vadd.f32 %v1502, 0.0
    %vm1504 = vcmask 255104
    %v1505 = vsel %vm1504, %v1491, -inf
    %1506 = vmax.xlane.f32.xlu0 %v1505
    %v1507 = vpop.xlane.xlu0 %1506
    %v1508 = vlaneseq
    %v1509 = vshrl.u32 %v1508, 7
    %v1510 = vsub.s32 1, %v1509
    %v1511 = vrot.slane %v1174, %v1510
    %v1512 = vmul.f32 %v1507, %v1511
    %v1513 = vadd.f32 %v1503, %v1512
    %v1514 = vsub.f32 %v1491, %v1513
    %v1515 = vmul.f32 %v1514, 1.442695
    %v1516 = vpow.pop %v1515
    %v1518 = vsel %vm1331, %v1516, 0
    %v1520 = vsel %vm1331, %v1174, 0
    %1522 = vmatprep.subr.mxu0 0.0
    %1523 = vmatpush1.xpose.msra.mxu0 0.0
    %1524 = vmatprep.subr.mxu0 0.0
    %1525 = vmatpush1.xpose.msra.mxu0 0.0
    %1526 = vmatprep.subr.mxu0 0.0
    %1527 = vmatpush1.xpose.msra.mxu0 0.0
    %1528 = vmatprep.subr.mxu0 0.0
    %1529 = vmatpush1.xpose.msra.mxu0 0.0
    %1530 = vmatprep.subr.mxu0 0.0
    %1531 = vmatpush1.xpose.msra.mxu0 0.0
    %1532 = vmatprep.subr.mxu0 0.0
    %1533 = vmatpush1.xpose.msra.mxu0 0.0
    %1534 = vmatprep.subr.mxu0 0.0
    %1535 = vmatpush1.xpose.msra.mxu0 0.0
    %1536 = vmatprep.subr.mxu0 0.0
    %1537 = vmatpush1.xpose.msra.mxu0 0.0
    %1538 = vmatprep.subr.mxu0 0.0
    %1539 = vmatpush1.xpose.msra.mxu0 0.0
    %1540 = vmatprep.subr.mxu0 0.0
    %1541 = vmatpush1.xpose.msra.mxu0 0.0
    %1542 = vmatprep.subr.mxu0 0.0
    %1543 = vmatpush1.xpose.msra.mxu0 0.0
    %1544 = vmatprep.subr.mxu0 0.0
    %1545 = vmatpush1.xpose.msra.mxu0 0.0
    %1546 = vmatprep.subr.mxu0 0.0
    %1547 = vmatpush1.xpose.msra.mxu0 0.0
    %1548 = vmatprep.subr.mxu0 0.0
    %1549 = vmatpush1.xpose.msra.mxu0 0.0
    %1550 = vmatprep.subr.mxu0 0.0
    %1551 = vmatpush1.xpose.msra.mxu0 0.0
    %1552 = vmatprep.subr.mxu0 0.0
    %1553 = vmatpush1.xpose.msra.mxu0 %v1520
    %1554 = vmatprep.subr.mxu0 0.0
    %1555 = vmatpush2.xpose.msra.mxu0 0.0
    %1556 = vmatprep.subr.mxu0 0.0
    %1557 = vmatpush2.xpose.msra.mxu0 0.0
    %1558 = vmatprep.subr.mxu0 0.0
    %1559 = vmatpush2.xpose.msra.mxu0 0.0
    %1560 = vmatprep.subr.mxu0 0.0
    %1561 = vmatpush2.xpose.msra.mxu0 0.0
    %1562 = vmatprep.subr.mxu0 0.0
    %1563 = vmatpush2.xpose.msra.mxu0 0.0
    %1564 = vmatprep.subr.mxu0 0.0
    %1565 = vmatpush2.xpose.msra.mxu0 0.0
    %1566 = vmatprep.subr.mxu0 0.0
    %1567 = vmatpush2.xpose.msra.mxu0 0.0
    %1568 = vmatprep.subr.mxu0 0.0
    %1569 = vmatpush2.xpose.msra.mxu0 0.0
    %1570 = vmatprep.subr.mxu0 0.0
    %1571 = vmatpush2.xpose.msra.mxu0 0.0
    %1572 = vmatprep.subr.mxu0 0.0
    %1573 = vmatpush2.xpose.msra.mxu0 0.0
    %1574 = vmatprep.subr.mxu0 0.0
    %1575 = vmatpush2.xpose.msra.mxu0 0.0
    %1576 = vmatprep.subr.mxu0 0.0
    %1577 = vmatpush2.xpose.msra.mxu0 0.0
    %1578 = vmatprep.subr.mxu0 0.0
    %1579 = vmatpush2.xpose.msra.mxu0 0.0
    %1580 = vmatprep.subr.mxu0 0.0
    %1581 = vmatpush2.xpose.msra.mxu0 0.0
    %1582 = vmatprep.subr.mxu0 0.0
    %1583 = vmatpush2.xpose.msra.mxu0 0.0
    %1584 = vmatprep.subr.mxu0 0.0
    %1585 = vmatpush2.xpose.msra.mxu0 0.0
    %1586 = vmatprep.mubr.f32.mxu0 0.0
    %1587 = vmatmul.mubr.f32.gmra.mxu0 %v1518
    %v1588 = vpop.f32.mrf.mxu0
    %v1589 = vadd.f32 0.0, %v1588
    %v1590 = vpop.f32.mrf.mxu0
    %1591 = vdwg.mxu0
    %v1593 = vsel %vm1253, %v1589, 0
    %1595 = vmatprep.subr.mxu0 0.0
    %1596 = vmatpush1.msra.mxu0 0.0
    %1597 = vmatprep.subr.mxu0 0.0
    %1598 = vmatpush1.msra.mxu0 0.0
    %1599 = vmatprep.subr.mxu0 0.0
    %1600 = vmatpush1.msra.mxu0 0.0
    %1601 = vmatprep.subr.mxu0 0.0
    %1602 = vmatpush1.msra.mxu0 0.0
    %1603 = vmatprep.subr.mxu0 0.0
    %1604 = vmatpush1.msra.mxu0 0.0
    %1605 = vmatprep.subr.mxu0 0.0
    %1606 = vmatpush1.msra.mxu0 0.0
    %1607 = vmatprep.subr.mxu0 0.0
    %1608 = vmatpush1.msra.mxu0 0.0
    %1609 = vmatprep.subr.mxu0 0.0
    %1610 = vmatpush1.msra.mxu0 0.0
    %1611 = vmatprep.subr.mxu0 0.0
    %1612 = vmatpush1.msra.mxu0 0.0
    %1613 = vmatprep.subr.mxu0 0.0
    %1614 = vmatpush1.msra.mxu0 0.0
    %1615 = vmatprep.subr.mxu0 0.0
    %1616 = vmatpush1.msra.mxu0 0.0
    %1617 = vmatprep.subr.mxu0 0.0
    %1618 = vmatpush1.msra.mxu0 0.0
    %1619 = vmatprep.subr.mxu0 0.0
    %1620 = vmatpush1.msra.mxu0 0.0
    %1621 = vmatprep.subr.mxu0 0.0
    %1622 = vmatpush1.msra.mxu0 0.0
    %1623 = vmatprep.subr.mxu0 0.0
    %1624 = vmatpush1.msra.mxu0 0.0
    %1625 = vmatprep.subr.mxu0 0.0
    %1626 = vmatpush1.msra.mxu0 %v1259
    %1627 = vmatprep.subr.mxu0 0.0
    %1628 = vmatpush2.msra.mxu0 0.0
    %1629 = vmatprep.subr.mxu0 0.0
    %1630 = vmatpush2.msra.mxu0 0.0
    %1631 = vmatprep.subr.mxu0 0.0
    %1632 = vmatpush2.msra.mxu0 0.0
    %1633 = vmatprep.subr.mxu0 0.0
    %1634 = vmatpush2.msra.mxu0 0.0
    %1635 = vmatprep.subr.mxu0 0.0
    %1636 = vmatpush2.msra.mxu0 0.0
    %1637 = vmatprep.subr.mxu0 0.0
    %1638 = vmatpush2.msra.mxu0 0.0
    %1639 = vmatprep.subr.mxu0 0.0
    %1640 = vmatpush2.msra.mxu0 0.0
    %1641 = vmatprep.subr.mxu0 0.0
    %1642 = vmatpush2.msra.mxu0 0.0
    %1643 = vmatprep.subr.mxu0 0.0
    %1644 = vmatpush2.msra.mxu0 0.0
    %1645 = vmatprep.subr.mxu0 0.0
    %1646 = vmatpush2.msra.mxu0 0.0
    %1647 = vmatprep.subr.mxu0 0.0
    %1648 = vmatpush2.msra.mxu0 0.0
    %1649 = vmatprep.subr.mxu0 0.0
    %1650 = vmatpush2.msra.mxu0 0.0
    %1651 = vmatprep.subr.mxu0 0.0
    %1652 = vmatpush2.msra.mxu0 0.0
    %1653 = vmatprep.subr.mxu0 0.0
    %1654 = vmatpush2.msra.mxu0 0.0
    %1655 = vmatprep.subr.mxu0 0.0
    %1656 = vmatpush2.msra.mxu0 0.0
    %1657 = vmatprep.subr.mxu0 0.0
    %1658 = vmatpush2.msra.mxu0 0.0
    %1659 = vmatprep.mubr.f32.mxu0 0.0
    %1660 = vmatmul.mubr.f32.gmra.mxu0 %v1593
    %v1661 = vpop.f32.mrf.mxu0
    %v1662 = vadd.f32 0.0, %v1661
    %v1663 = vpop.f32.mrf.mxu0
    %1664 = vdwg.mxu0
    %v1665 = vrcp.pop %v1662
    %v1666 = vmul.f32 %v1516, %v1665
    %v1667 = vld [vmem:[%s13] sm:$0xff]
    %v1668 = vld [vmem:[%s13 + $0x8] sm:$0xff]
    %v1669 = vld [vmem:[%s14] sm:$0x1]
    %v1671 = vlaneseq
    %v1672 = vshrl.u32 %v1671, 7
    %v1673 = vsub.s32 0, %v1672
    %v1674 = vrot.slane %v1669, %v1673
    %1676 = vmatprep.subr.mxu0 0.0
    %1677 = vmatpush1.msra.mxu0 0.0
    %1678 = vmatprep.subr.mxu0 0.0
    %1679 = vmatpush1.msra.mxu0 0.0
    %1680 = vmatprep.subr.mxu0 0.0
    %1681 = vmatpush1.msra.mxu0 0.0
    %1682 = vmatprep.subr.mxu0 0.0
    %1683 = vmatpush1.msra.mxu0 0.0
    %1684 = vmatprep.subr.mxu0 0.0
    %1685 = vmatpush1.msra.mxu0 0.0
    %1686 = vmatprep.subr.mxu0 0.0
    %1687 = vmatpush1.msra.mxu0 0.0
    %1688 = vmatprep.subr.mxu0 0.0
    %1689 = vmatpush1.msra.mxu0 0.0
    %1690 = vmatprep.subr.mxu0 0.0
    %1691 = vmatpush1.msra.mxu0 0.0
    %1692 = vmatprep.subr.mxu0 0.0
    %1693 = vmatpush1.msra.mxu0 0.0
    %1694 = vmatprep.subr.mxu0 0.0
    %1695 = vmatpush1.msra.mxu0 0.0
    %1696 = vmatprep.subr.mxu0 0.0
    %1697 = vmatpush1.msra.mxu0 0.0
    %1698 = vmatprep.subr.mxu0 0.0
    %1699 = vmatpush1.msra.mxu0 0.0
    %1700 = vmatprep.subr.mxu0 0.0
    %1701 = vmatpush1.msra.mxu0 0.0
    %1702 = vmatprep.subr.mxu0 0.0
    %1703 = vmatpush1.msra.mxu0 0.0
    %1704 = vmatprep.subr.mxu0 0.0
    %1705 = vmatpush1.msra.mxu0 %v1668
    %1706 = vmatprep.subr.mxu0 0.0
    %1707 = vmatpush1.msra.mxu0 %v1667
    %1708 = vmatprep.subr.mxu0 0.0
    %1709 = vmatpush2.msra.mxu0 0.0
    %1710 = vmatprep.subr.mxu0 0.0
    %1711 = vmatpush2.msra.mxu0 0.0
    %1712 = vmatprep.subr.mxu0 0.0
    %1713 = vmatpush2.msra.mxu0 0.0
    %1714 = vmatprep.subr.mxu0 0.0
    %1715 = vmatpush2.msra.mxu0 0.0
    %1716 = vmatprep.subr.mxu0 0.0
    %1717 = vmatpush2.msra.mxu0 0.0
    %1718 = vmatprep.subr.mxu0 0.0
    %1719 = vmatpush2.msra.mxu0 0.0
    %1720 = vmatprep.subr.mxu0 0.0
    %1721 = vmatpush2.msra.mxu0 0.0
    %1722 = vmatprep.subr.mxu0 0.0
    %1723 = vmatpush2.msra.mxu0 0.0
    %1724 = vmatprep.subr.mxu0 0.0
    %1725 = vmatpush2.msra.mxu0 0.0
    %1726 = vmatprep.subr.mxu0 0.0
    %1727 = vmatpush2.msra.mxu0 0.0
    %1728 = vmatprep.subr.mxu0 0.0
    %1729 = vmatpush2.msra.mxu0 0.0
    %1730 = vmatprep.subr.mxu0 0.0
    %1731 = vmatpush2.msra.mxu0 0.0
    %1732 = vmatprep.subr.mxu0 0.0
    %1733 = vmatpush2.msra.mxu0 0.0
    %1734 = vmatprep.subr.mxu0 0.0
    %1735 = vmatpush2.msra.mxu0 0.0
    %1736 = vmatprep.subr.mxu0 0.0
    %1737 = vmatpush2.msra.mxu0 0.0
    %1738 = vmatprep.subr.mxu0 0.0
    %1739 = vmatpush2.msra.mxu0 0.0
    %1740 = vmatprep.mubr.f32.mxu0 0.0
    %1741 = vmatmul.mubr.f32.gmra.mxu0 %v1181
    %v1742 = vpop.f32.mrf.mxu0
    %v1743 = vadd.f32 %v1674, %v1742
    %v1744 = vpop.f32.mrf.mxu0
    %1745 = vdwg.mxu0
    %v1746 = vlaneseq
    %v1747 = vshrl.u32 %v1746, 7
    %v1748 = vsub.s32 0, %v1747
    %v1749 = vrot.slane %v1666, %v1748
    %v1750 = vmul.f32 %v1170, %v1749
    %v1751 = vmul.f32 %v1171, %v1749
    %v1752 = vmul.f32 %v1172, %v1749
    %v1753 = vmul.f32 %v1173, %v1749
    %v1755 = vsel %vm1331, %v1750, 0
    %v1758 = vsel %vm1331, %v1751, 0
    %v1761 = vsel %vm1331, %v1752, 0
    %v1764 = vsel %vm1331, %v1753, 0
    %1766 = vmatprep.subr.mxu0 0.0
    %1767 = vmatpush1.xpose.msra.mxu0 0.0
    %1768 = vmatprep.subr.mxu0 0.0
    %1769 = vmatpush1.xpose.msra.mxu0 0.0
    %1770 = vmatprep.subr.mxu0 0.0
    %1771 = vmatpush1.xpose.msra.mxu0 0.0
    %1772 = vmatprep.subr.mxu0 0.0
    %1773 = vmatpush1.xpose.msra.mxu0 0.0
    %1774 = vmatprep.subr.mxu0 0.0
    %1775 = vmatpush1.xpose.msra.mxu0 0.0
    %1776 = vmatprep.subr.mxu0 0.0
    %1777 = vmatpush1.xpose.msra.mxu0 0.0
    %1778 = vmatprep.subr.mxu0 0.0
    %1779 = vmatpush1.xpose.msra.mxu0 0.0
    %1780 = vmatprep.subr.mxu0 0.0
    %1781 = vmatpush1.xpose.msra.mxu0 0.0
    %1782 = vmatprep.subr.mxu0 0.0
    %1783 = vmatpush1.xpose.msra.mxu0 0.0
    %1784 = vmatprep.subr.mxu0 0.0
    %1785 = vmatpush1.xpose.msra.mxu0 0.0
    %1786 = vmatprep.subr.mxu0 0.0
    %1787 = vmatpush1.xpose.msra.mxu0 0.0
    %1788 = vmatprep.subr.mxu0 0.0
    %1789 = vmatpush1.xpose.msra.mxu0 0.0
    %1790 = vmatprep.subr.mxu0 0.0
    %1791 = vmatpush1.xpose.msra.mxu0 %v1764
    %1792 = vmatprep.subr.mxu0 0.0
    %1793 = vmatpush1.xpose.msra.mxu0 %v1761
    %1794 = vmatprep.subr.mxu0 0.0
    %1795 = vmatpush1.xpose.msra.mxu0 %v1758
    %1796 = vmatprep.subr.mxu0 0.0
    %1797 = vmatpush1.xpose.msra.mxu0 %v1755
    %1798 = vmatprep.subr.mxu0 0.0
    %1799 = vmatpush2.xpose.msra.mxu0 0.0
    %1800 = vmatprep.subr.mxu0 0.0
    %1801 = vmatpush2.xpose.msra.mxu0 0.0
    %1802 = vmatprep.subr.mxu0 0.0
    %1803 = vmatpush2.xpose.msra.mxu0 0.0
    %1804 = vmatprep.subr.mxu0 0.0
    %1805 = vmatpush2.xpose.msra.mxu0 0.0
    %1806 = vmatprep.subr.mxu0 0.0
    %1807 = vmatpush2.xpose.msra.mxu0 0.0
    %1808 = vmatprep.subr.mxu0 0.0
    %1809 = vmatpush2.xpose.msra.mxu0 0.0
    %1810 = vmatprep.subr.mxu0 0.0
    %1811 = vmatpush2.xpose.msra.mxu0 0.0
    %1812 = vmatprep.subr.mxu0 0.0
    %1813 = vmatpush2.xpose.msra.mxu0 0.0
    %1814 = vmatprep.subr.mxu0 0.0
    %1815 = vmatpush2.xpose.msra.mxu0 0.0
    %1816 = vmatprep.subr.mxu0 0.0
    %1817 = vmatpush2.xpose.msra.mxu0 0.0
    %1818 = vmatprep.subr.mxu0 0.0
    %1819 = vmatpush2.xpose.msra.mxu0 0.0
    %1820 = vmatprep.subr.mxu0 0.0
    %1821 = vmatpush2.xpose.msra.mxu0 0.0
    %1822 = vmatprep.subr.mxu0 0.0
    %1823 = vmatpush2.xpose.msra.mxu0 0.0
    %1824 = vmatprep.subr.mxu0 0.0
    %1825 = vmatpush2.xpose.msra.mxu0 0.0
    %1826 = vmatprep.subr.mxu0 0.0
    %1827 = vmatpush2.xpose.msra.mxu0 0.0
    %1828 = vmatprep.subr.mxu0 0.0
    %1829 = vmatpush2.xpose.msra.mxu0 0.0
    %1830 = vmatprep.mubr.f32.mxu0 0.0
    %1831 = vmatmul.mubr.f32.gmra.mxu0 %v1520
    %v1832 = vpop.f32.mrf.mxu0
    %v1833 = vadd.f32 0.0, %v1832
    %v1834 = vpop.f32.mrf.mxu0
    %1835 = vdwg.mxu0
    %v1836 = vld [vmem:[%s12] sm:$0xff]
    %v1837 = vld [vmem:[%s12 + $0x8] sm:$0xff]
    %v1838 = vld [vmem:[%s12 + $0x10] sm:$0xff]
    %v1839 = vld [vmem:[%s12 + $0x18] sm:$0xff]
    %v1841 = vsel %vm1331, %v1833, 0
    %1843 = vmatprep.subr.mxu0 0.0
    %1844 = vmatpush1.msra.mxu0 0.0
    %1845 = vmatprep.subr.mxu0 0.0
    %1846 = vmatpush1.msra.mxu0 0.0
    %1847 = vmatprep.subr.mxu0 0.0
    %1848 = vmatpush1.msra.mxu0 0.0
    %1849 = vmatprep.subr.mxu0 0.0
    %1850 = vmatpush1.msra.mxu0 0.0
    %1851 = vmatprep.subr.mxu0 0.0
    %1852 = vmatpush1.msra.mxu0 0.0
    %1853 = vmatprep.subr.mxu0 0.0
    %1854 = vmatpush1.msra.mxu0 0.0
    %1855 = vmatprep.subr.mxu0 0.0
    %1856 = vmatpush1.msra.mxu0 0.0
    %1857 = vmatprep.subr.mxu0 0.0
    %1858 = vmatpush1.msra.mxu0 0.0
    %1859 = vmatprep.subr.mxu0 0.0
    %1860 = vmatpush1.msra.mxu0 0.0
    %1861 = vmatprep.subr.mxu0 0.0
    %1862 = vmatpush1.msra.mxu0 0.0
    %1863 = vmatprep.subr.mxu0 0.0
    %1864 = vmatpush1.msra.mxu0 0.0
    %1865 = vmatprep.subr.mxu0 0.0
    %1866 = vmatpush1.msra.mxu0 0.0
    %1867 = vmatprep.subr.mxu0 0.0
    %1868 = vmatpush1.msra.mxu0 %v1839
    %1869 = vmatprep.subr.mxu0 0.0
    %1870 = vmatpush1.msra.mxu0 %v1838
    %1871 = vmatprep.subr.mxu0 0.0
    %1872 = vmatpush1.msra.mxu0 %v1837
    %1873 = vmatprep.subr.mxu0 0.0
    %1874 = vmatpush1.msra.mxu0 %v1836
    %1875 = vmatprep.subr.mxu0 0.0
    %1876 = vmatpush2.msra.mxu0 0.0
    %1877 = vmatprep.subr.mxu0 0.0
    %1878 = vmatpush2.msra.mxu0 0.0
    %1879 = vmatprep.subr.mxu0 0.0
    %1880 = vmatpush2.msra.mxu0 0.0
    %1881 = vmatprep.subr.mxu0 0.0
    %1882 = vmatpush2.msra.mxu0 0.0
    %1883 = vmatprep.subr.mxu0 0.0
    %1884 = vmatpush2.msra.mxu0 0.0
    %1885 = vmatprep.subr.mxu0 0.0
    %1886 = vmatpush2.msra.mxu0 0.0
    %1887 = vmatprep.subr.mxu0 0.0
    %1888 = vmatpush2.msra.mxu0 0.0
    %1889 = vmatprep.subr.mxu0 0.0
    %1890 = vmatpush2.msra.mxu0 0.0
    %1891 = vmatprep.subr.mxu0 0.0
    %1892 = vmatpush2.msra.mxu0 0.0
    %1893 = vmatprep.subr.mxu0 0.0
    %1894 = vmatpush2.msra.mxu0 0.0
    %1895 = vmatprep.subr.mxu0 0.0
    %1896 = vmatpush2.msra.mxu0 0.0
    %1897 = vmatprep.subr.mxu0 0.0
    %1898 = vmatpush2.msra.mxu0 0.0
    %1899 = vmatprep.subr.mxu0 0.0
    %1900 = vmatpush2.msra.mxu0 0.0
    %1901 = vmatprep.subr.mxu0 0.0
    %1902 = vmatpush2.msra.mxu0 0.0
    %1903 = vmatprep.subr.mxu0 0.0
    %1904 = vmatpush2.msra.mxu0 0.0
    %1905 = vmatprep.subr.mxu0 0.0
    %1906 = vmatpush2.msra.mxu0 0.0
    %1907 = vmatprep.mubr.f32.mxu0 0.0
    %1908 = vmatmul.mubr.f32.gmra.mxu0 %v1841
    %v1909 = vpop.f32.mrf.mxu0
    %v1910 = vadd.f32 0.0, %v1909
    %v1911 = vpop.f32.mrf.mxu0
    %1912 = vdwg.mxu0
    %v1913 = vadd.f32 %v1743, %v1910
    %v1914 = vlaneseq
    %v1915 = vshrl.u32 %v1914, 7
    %v1916 = vsub.s32 1, %v1915
    %v1917 = vrot.slane %v1666, %v1916
    %v1918 = vmul.f32 %v1170, %v1917
    %v1919 = vmul.f32 %v1171, %v1917
    %v1920 = vmul.f32 %v1172, %v1917
    %v1921 = vmul.f32 %v1173, %v1917
    %v1923 = vsel %vm1331, %v1918, 0
    %v1926 = vsel %vm1331, %v1919, 0
    %v1929 = vsel %vm1331, %v1920, 0
    %v1932 = vsel %vm1331, %v1921, 0
    %1934 = vmatprep.subr.mxu0 0.0
    %1935 = vmatpush1.xpose.msra.mxu0 0.0
    %1936 = vmatprep.subr.mxu0 0.0
    %1937 = vmatpush1.xpose.msra.mxu0 0.0
    %1938 = vmatprep.subr.mxu0 0.0
    %1939 = vmatpush1.xpose.msra.mxu0 0.0
    %1940 = vmatprep.subr.mxu0 0.0
    %1941 = vmatpush1.xpose.msra.mxu0 0.0
    %1942 = vmatprep.subr.mxu0 0.0
    %1943 = vmatpush1.xpose.msra.mxu0 0.0
    %1944 = vmatprep.subr.mxu0 0.0
    %1945 = vmatpush1.xpose.msra.mxu0 0.0
    %1946 = vmatprep.subr.mxu0 0.0
    %1947 = vmatpush1.xpose.msra.mxu0 0.0
    %1948 = vmatprep.subr.mxu0 0.0
    %1949 = vmatpush1.xpose.msra.mxu0 0.0
    %1950 = vmatprep.subr.mxu0 0.0
    %1951 = vmatpush1.xpose.msra.mxu0 0.0
    %1952 = vmatprep.subr.mxu0 0.0
    %1953 = vmatpush1.xpose.msra.mxu0 0.0
    %1954 = vmatprep.subr.mxu0 0.0
    %1955 = vmatpush1.xpose.msra.mxu0 0.0
    %1956 = vmatprep.subr.mxu0 0.0
    %1957 = vmatpush1.xpose.msra.mxu0 0.0
    %1958 = vmatprep.subr.mxu0 0.0
    %1959 = vmatpush1.xpose.msra.mxu0 %v1932
    %1960 = vmatprep.subr.mxu0 0.0
    %1961 = vmatpush1.xpose.msra.mxu0 %v1929
    %1962 = vmatprep.subr.mxu0 0.0
    %1963 = vmatpush1.xpose.msra.mxu0 %v1926
    %1964 = vmatprep.subr.mxu0 0.0
    %1965 = vmatpush1.xpose.msra.mxu0 %v1923
    %1966 = vmatprep.subr.mxu0 0.0
    %1967 = vmatpush2.xpose.msra.mxu0 0.0
    %1968 = vmatprep.subr.mxu0 0.0
    %1969 = vmatpush2.xpose.msra.mxu0 0.0
    %1970 = vmatprep.subr.mxu0 0.0
    %1971 = vmatpush2.xpose.msra.mxu0 0.0
    %1972 = vmatprep.subr.mxu0 0.0
    %1973 = vmatpush2.xpose.msra.mxu0 0.0
    %1974 = vmatprep.subr.mxu0 0.0
    %1975 = vmatpush2.xpose.msra.mxu0 0.0
    %1976 = vmatprep.subr.mxu0 0.0
    %1977 = vmatpush2.xpose.msra.mxu0 0.0
    %1978 = vmatprep.subr.mxu0 0.0
    %1979 = vmatpush2.xpose.msra.mxu0 0.0
    %1980 = vmatprep.subr.mxu0 0.0
    %1981 = vmatpush2.xpose.msra.mxu0 0.0
    %1982 = vmatprep.subr.mxu0 0.0
    %1983 = vmatpush2.xpose.msra.mxu0 0.0
    %1984 = vmatprep.subr.mxu0 0.0
    %1985 = vmatpush2.xpose.msra.mxu0 0.0
    %1986 = vmatprep.subr.mxu0 0.0
    %1987 = vmatpush2.xpose.msra.mxu0 0.0
    %1988 = vmatprep.subr.mxu0 0.0
    %1989 = vmatpush2.xpose.msra.mxu0 0.0
    %1990 = vmatprep.subr.mxu0 0.0
    %1991 = vmatpush2.xpose.msra.mxu0 0.0
    %1992 = vmatprep.subr.mxu0 0.0
    %1993 = vmatpush2.xpose.msra.mxu0 0.0
    %1994 = vmatprep.subr.mxu0 0.0
    %1995 = vmatpush2.xpose.msra.mxu0 0.0
    %1996 = vmatprep.subr.mxu0 0.0
    %1997 = vmatpush2.xpose.msra.mxu0 0.0
    %1998 = vmatprep.mubr.f32.mxu0 0.0
    %1999 = vmatmul.mubr.f32.gmra.mxu0 %v1520
    %v2000 = vpop.f32.mrf.mxu0
    %v2001 = vadd.f32 0.0, %v2000
    %v2002 = vpop.f32.mrf.mxu0
    %2003 = vdwg.mxu0
    %v2004 = vld [vmem:[%s12 + $0x20] sm:$0xff]
    %v2005 = vld [vmem:[%s12 + $0x28] sm:$0xff]
    %v2006 = vld [vmem:[%s12 + $0x30] sm:$0xff]
    %v2007 = vld [vmem:[%s12 + $0x38] sm:$0xff]
    %v2009 = vsel %vm1331, %v2001, 0
    %2011 = vmatprep.subr.mxu0 0.0
    %2012 = vmatpush1.msra.mxu0 0.0
    %2013 = vmatprep.subr.mxu0 0.0
    %2014 = vmatpush1.msra.mxu0 0.0
    %2015 = vmatprep.subr.mxu0 0.0
    %2016 = vmatpush1.msra.mxu0 0.0
    %2017 = vmatprep.subr.mxu0 0.0
    %2018 = vmatpush1.msra.mxu0 0.0
    %2019 = vmatprep.subr.mxu0 0.0
    %2020 = vmatpush1.msra.mxu0 0.0
    %2021 = vmatprep.subr.mxu0 0.0
    %2022 = vmatpush1.msra.mxu0 0.0
    %2023 = vmatprep.subr.mxu0 0.0
    %2024 = vmatpush1.msra.mxu0 0.0
    %2025 = vmatprep.subr.mxu0 0.0
    %2026 = vmatpush1.msra.mxu0 0.0
    %2027 = vmatprep.subr.mxu0 0.0
    %2028 = vmatpush1.msra.mxu0 0.0
    %2029 = vmatprep.subr.mxu0 0.0
    %2030 = vmatpush1.msra.mxu0 0.0
    %2031 = vmatprep.subr.mxu0 0.0
    %2032 = vmatpush1.msra.mxu0 0.0
    %2033 = vmatprep.subr.mxu0 0.0
    %2034 = vmatpush1.msra.mxu0 0.0
    %2035 = vmatprep.subr.mxu0 0.0
    %2036 = vmatpush1.msra.mxu0 %v2007
    %2037 = vmatprep.subr.mxu0 0.0
    %2038 = vmatpush1.msra.mxu0 %v2006
    %2039 = vmatprep.subr.mxu0 0.0
    %2040 = vmatpush1.msra.mxu0 %v2005
    %2041 = vmatprep.subr.mxu0 0.0
    %2042 = vmatpush1.msra.mxu0 %v2004
    %2043 = vmatprep.subr.mxu0 0.0
    %2044 = vmatpush2.msra.mxu0 0.0
    %2045 = vmatprep.subr.mxu0 0.0
    %2046 = vmatpush2.msra.mxu0 0.0
    %2047 = vmatprep.subr.mxu0 0.0
    %2048 = vmatpush2.msra.mxu0 0.0
    %2049 = vmatprep.subr.mxu0 0.0
    %2050 = vmatpush2.msra.mxu0 0.0
    %2051 = vmatprep.subr.mxu0 0.0
    %2052 = vmatpush2.msra.mxu0 0.0
    %2053 = vmatprep.subr.mxu0 0.0
    %2054 = vmatpush2.msra.mxu0 0.0
    %2055 = vmatprep.subr.mxu0 0.0
    %2056 = vmatpush2.msra.mxu0 0.0
    %2057 = vmatprep.subr.mxu0 0.0
    %2058 = vmatpush2.msra.mxu0 0.0
    %2059 = vmatprep.subr.mxu0 0.0
    %2060 = vmatpush2.msra.mxu0 0.0
    %2061 = vmatprep.subr.mxu0 0.0
    %2062 = vmatpush2.msra.mxu0 0.0
    %2063 = vmatprep.subr.mxu0 0.0
    %2064 = vmatpush2.msra.mxu0 0.0
    %2065 = vmatprep.subr.mxu0 0.0
    %2066 = vmatpush2.msra.mxu0 0.0
    %2067 = vmatprep.subr.mxu0 0.0
    %2068 = vmatpush2.msra.mxu0 0.0
    %2069 = vmatprep.subr.mxu0 0.0
    %2070 = vmatpush2.msra.mxu0 0.0
    %2071 = vmatprep.subr.mxu0 0.0
    %2072 = vmatpush2.msra.mxu0 0.0
    %2073 = vmatprep.subr.mxu0 0.0
    %2074 = vmatpush2.msra.mxu0 0.0
    %2075 = vmatprep.mubr.f32.mxu0 0.0
    %2076 = vmatmul.mubr.f32.gmra.mxu0 %v2009
    %v2077 = vpop.f32.mrf.mxu0
    %v2078 = vadd.f32 0.0, %v2077
    %v2079 = vpop.f32.mrf.mxu0
    %2080 = vdwg.mxu0
    %v2081 = vadd.f32 %v1913, %v2078
    %v2082 = vmax.f32 %v2081, 0.0
    %v2083 = vld [vmem:[%s15] sm:$0xff]
    %v2084 = vld [vmem:[%s15 + $0x8] sm:$0xff]
    %v2085 = vld [vmem:[%s16] sm:$0x1]
    %v2087 = vlaneseq
    %v2088 = vshrl.u32 %v2087, 7
    %v2089 = vsub.s32 0, %v2088
    %v2090 = vrot.slane %v2085, %v2089
    %v2093 = vsel %vm140, %v2082, 0
    %2095 = vmatprep.subr.mxu0 0.0
    %2096 = vmatpush1.msra.mxu0 0.0
    %2097 = vmatprep.subr.mxu0 0.0
    %2098 = vmatpush1.msra.mxu0 0.0
    %2099 = vmatprep.subr.mxu0 0.0
    %2100 = vmatpush1.msra.mxu0 0.0
    %2101 = vmatprep.subr.mxu0 0.0
    %2102 = vmatpush1.msra.mxu0 0.0
    %2103 = vmatprep.subr.mxu0 0.0
    %2104 = vmatpush1.msra.mxu0 0.0
    %2105 = vmatprep.subr.mxu0 0.0
    %2106 = vmatpush1.msra.mxu0 0.0
    %2107 = vmatprep.subr.mxu0 0.0
    %2108 = vmatpush1.msra.mxu0 0.0
    %2109 = vmatprep.subr.mxu0 0.0
    %2110 = vmatpush1.msra.mxu0 0.0
    %2111 = vmatprep.subr.mxu0 0.0
    %2112 = vmatpush1.msra.mxu0 0.0
    %2113 = vmatprep.subr.mxu0 0.0
    %2114 = vmatpush1.msra.mxu0 0.0
    %2115 = vmatprep.subr.mxu0 0.0
    %2116 = vmatpush1.msra.mxu0 0.0
    %2117 = vmatprep.subr.mxu0 0.0
    %2118 = vmatpush1.msra.mxu0 0.0
    %2119 = vmatprep.subr.mxu0 0.0
    %2120 = vmatpush1.msra.mxu0 0.0
    %2121 = vmatprep.subr.mxu0 0.0
    %2122 = vmatpush1.msra.mxu0 0.0
    %2123 = vmatprep.subr.mxu0 0.0
    %2124 = vmatpush1.msra.mxu0 %v2084
    %2125 = vmatprep.subr.mxu0 0.0
    %2126 = vmatpush1.msra.mxu0 %v2083
    %2127 = vmatprep.subr.mxu0 0.0
    %2128 = vmatpush2.msra.mxu0 0.0
    %2129 = vmatprep.subr.mxu0 0.0
    %2130 = vmatpush2.msra.mxu0 0.0
    %2131 = vmatprep.subr.mxu0 0.0
    %2132 = vmatpush2.msra.mxu0 0.0
    %2133 = vmatprep.subr.mxu0 0.0
    %2134 = vmatpush2.msra.mxu0 0.0
    %2135 = vmatprep.subr.mxu0 0.0
    %2136 = vmatpush2.msra.mxu0 0.0
    %2137 = vmatprep.subr.mxu0 0.0
    %2138 = vmatpush2.msra.mxu0 0.0
    %2139 = vmatprep.subr.mxu0 0.0
    %2140 = vmatpush2.msra.mxu0 0.0
    %2141 = vmatprep.subr.mxu0 0.0
    %2142 = vmatpush2.msra.mxu0 0.0
    %2143 = vmatprep.subr.mxu0 0.0
    %2144 = vmatpush2.msra.mxu0 0.0
    %2145 = vmatprep.subr.mxu0 0.0
    %2146 = vmatpush2.msra.mxu0 0.0
    %2147 = vmatprep.subr.mxu0 0.0
    %2148 = vmatpush2.msra.mxu0 0.0
    %2149 = vmatprep.subr.mxu0 0.0
    %2150 = vmatpush2.msra.mxu0 0.0
    %2151 = vmatprep.subr.mxu0 0.0
    %2152 = vmatpush2.msra.mxu0 0.0
    %2153 = vmatprep.subr.mxu0 0.0
    %2154 = vmatpush2.msra.mxu0 0.0
    %2155 = vmatprep.subr.mxu0 0.0
    %2156 = vmatpush2.msra.mxu0 0.0
    %2157 = vmatprep.subr.mxu0 0.0
    %2158 = vmatpush2.msra.mxu0 0.0
    %2159 = vmatprep.mubr.f32.mxu0 0.0
    %2160 = vmatmul.mubr.f32.gmra.mxu0 %v2093
    %v2161 = vpop.f32.mrf.mxu0
    %v2162 = vadd.f32 %v2090, %v2161
    %v2163 = vpop.f32.mrf.mxu0
    %2164 = vdwg.mxu0
    %2165 = vst [vmem:[#allocation13] sm:$0x3] %v2162
    // Predicated region
    $region94: #{tpu_custom_call.1} parent=1 // pred_check
      _
    $region95: #{tpu_custom_call.1} parent=1 // pred_check_branch
      %2167 = sbr.rel (0) target = $region97
    $region96: #{tpu_custom_call.1} parent=1 // pred_region
      %s2169 = ssub.s32 32, 32
      %2170 = vsyncadd [#allocation4], %s2169
      %s2172 = sshll.u32 [#allocation13], 4
      %s2173 = int_to_ptr.vmem [resolvable:$true] %s2172
      %2175 = dma.vmem_to_hbm [thread:$0]  %s2173, 32, %s17, [#allocation4]
    $region97: #{tpu_custom_call.1} parent=1 // pred_fallthru
      _
    // Predicated region
    $region98: #{tpu_custom_call.1} parent=1 // pred_check
      _
    $region99: #{tpu_custom_call.1} parent=1 // pred_check_branch
      %2177 = sbr.rel (0) target = $region101
    $region100: #{tpu_custom_call.1} parent=1 // pred_region
      %2178 = dma.done [#allocation4], 32
    $region101: #{tpu_custom_call.1} parent=1 // pred_fallthru
      _
    %2179 = vsyncpa [#allocation3], 1
    %2180 = vsyncpa [#allocation6], 1
    %2181 = vsyncpa [#allocation9], 1
    %2182 = vsyncpa [#allocation12], 1
    %2183 = vsyncpa [#allocation4], 1

</llo_original>
